<compile_context>
chip_gen: v7x
topology: tpu7x:2x2x1
jax: 0.10.0
libtpu: 0.0.40
codegen_flags: <defaults>
</compile_context>

<pallas_src>
from functools import partial

import jax
import jax.numpy as jnp
from jax import lax
from jax.experimental import pallas as pl
from jax.experimental.pallas import tpu as pltpu

_MIB = 1024 * 1024


def _frame_working_set_bytes(hw_tile, cin, ccat):
    """Approximate per-step VMEM working set of the frame kernel (bytes)."""
    cin_pad = max(cin, 8)
    return (2 * cin_pad * hw_tile * 4        # x tile (f32), double-buffered
            + 2 * 8 * hw_tile * 4            # y tile (f32, sublane-padded), x2 buffers
            + ccat * hw_tile * 4             # f feature intermediate (f32)
            + ccat * hw_tile * 2             # bf16 copy of f for the MXU
            + 3 * 8 * hw_tile * 4            # inter/union/bce scratch (sublane-padded)
            + ccat * cin_pad * 2 + ccat * 4  # fused weights + per-sample filter
            + 4 * 128 * 4)                   # resident output blocks


def _choose_hw_tile(hw, cin, ccat, requested=None, budget_bytes=24 * _MIB):
    """Largest 128-multiple divisor of HW whose working set fits the budget."""
    if requested is not None:
        assert hw % requested == 0, "hw_tile must divide H*W"
        return requested
    for cand in (8192, 4096, 2048, 1024, 512, 256, 128):
        if hw % cand == 0 and _frame_working_set_bytes(cand, cin, ccat) <= budget_bytes:
            return cand
    return hw  # HW not a multiple of 128 -> single full-frame tile


def _vmem_cap_bytes():
    # Generation-aware cap: ~0.75x physical VMEM (v7x: 64 MiB -> 48 MiB,
    # v5e/v6e: 128 MiB -> 96 MiB).  Fallback is v7x-safe.
    try:
        return int(0.75 * pltpu.get_tpu_info().vmem_capacity_bytes)
    except Exception:  # pragma: no cover - info query unavailable
        return 48 * _MIB


def _vmem_limit_bytes(working_set_bytes):
    return int(max(32 * _MIB, min(_vmem_cap_bytes(), 2 * working_set_bytes)))


# --------------------------------------------------------------------------
# Kernel 1: per-sample discriminator initialization from frame 0
#   (TargetObject.initialize -> discriminator.init(ft[L], mask))
#   grid = (B, HW tiles); fused d3||d4 filter accumulated in the resident
#   (1, 1, Ccat) output block.
# --------------------------------------------------------------------------
def disc_init(x0, wcat_t, lb0, *, hw_tile):
    # x0    : (B, Cin, HW)   f32 frame-0 pixels (channels-first, lane = HW)
    # wcat_t: (Ccat, Cin)    bf16 fused, pre-transposed l3||l4 feature weights
    # lb0   : (B, 1, HW)     f32 frame-0 binary mask
    # out   : (B, 1, Ccat)   f32 fused per-sample discriminator filters
    B, Cin, HW = x0.shape
    Ccat = wcat_t.shape[0]
    n_hw = HW // hw_tile
    inv_hw = 1.0 / float(HW)

    def kernel(x_ref, w_ref, lb_ref, d_ref):
        h = pl.program_id(1)

        @pl.when(h == 0)
        def _():
            d_ref[...] = jnp.zeros_like(d_ref)

        # feature extractor stand-in: relu(W_t @ x), plain (M,K)x(K,N) matmul
        x_bf = x_ref[0].astype(jnp.bfloat16)                    # (Cin, hw_tile)
        f = jnp.maximum(
            jnp.dot(w_ref[...], x_bf,
                    preferred_element_type=jnp.float32), 0.0)   # (Ccat, hwt) f32
        tgt = (2.0 * lb_ref[0] - 1.0).astype(jnp.bfloat16)      # (1, hw_tile)
        # correlation-style closed form: d += (t . f^T) / HW (bf16 MXU inputs)
        contrib = lax.dot_general(tgt, f.astype(jnp.bfloat16),
                                  (((1,), (1,)), ((), ())),
                                  preferred_element_type=jnp.float32)  # (1, Ccat)
        d_ref[0] += contrib * inv_hw

    ws = _frame_working_set_bytes(hw_tile, Cin, Ccat)

    return pl.pallas_call(
        kernel,
        out_shape=jax.ShapeDtypeStruct((B, 1, Ccat), jnp.float32),
        grid_spec=pltpu.PrefetchScalarGridSpec(
            num_scalar_prefetch=0,
            grid=(B, n_hw),
            in_specs=[
                pl.BlockSpec((1, Cin, hw_tile), lambda b, h: (b, 0, h)),
                pl.BlockSpec((Ccat, Cin), lambda b, h: (0, 0)),
                pl.BlockSpec((1, 1, hw_tile), lambda b, h: (b, 0, h)),
            ],
            out_specs=pl.BlockSpec((1, 1, Ccat), lambda b, h: (b, 0, 0)),
        ),
        compiler_params=pltpu.CompilerParams(
            dimension_semantics=("parallel", "arbitrary"),
            vmem_limit_bytes=_vmem_limit_bytes(ws)),
    )(x0, wcat_t, lb0)


# --------------------------------------------------------------------------
# Kernel 2: all frames fused — _forward + intersection_over_union + BCELoss
#   grid = (B, T-1, HW tiles).  Element-wise partial sums live in VMEM
#   scratch; each (b, t) writes its own IoU / BCE row -> b and t are both
#   megacore-parallel.  Wrapper sums the tiny (B, T-1) result.
# --------------------------------------------------------------------------
def frame_forward(x, wcat_t, dcat_scaled, y, bias, *, hw_tile):
    # x           : (T, B, Cin, HW)  f32 pixels (frame 0 included; reads 1..T-1)
    # wcat_t      : (Ccat, Cin)      bf16 fused, pre-transposed feature weights
    # dcat_scaled : (B, 1, Ccat)     f32 per-sample filters (refiner alphas folded in)
    # y           : (T, B, 1, HW)    f32 ground-truth masks
    # bias        : (1,)             f32 refiner bias stand-in (SMEM)
    # outputs: (B, T-1, 1, 128) per-(sample, frame) IoU and BCE-sum
    #          (value replicated across the 128 lanes; read lane 0)
    T, B, Cin, HW = x.shape
    Ccat = wcat_t.shape[0]
    n_hw = HW // hw_tile
    n_frames = T - 1
    assert n_frames >= 1

    def kernel(x_ref, w_ref, d_ref, y_ref, bias_ref, iou_ref, bce_ref,
               inter_s, union_s, bce_s):
        h = pl.program_id(2)
        nh = pl.num_programs(2)

        @pl.when(h == 0)
        def _():
            inter_s[...] = jnp.zeros_like(inter_s)
            union_s[...] = jnp.zeros_like(union_s)
            bce_s[...] = jnp.zeros_like(bce_s)

        # ---- feature extractor stand-in (1x1 conv + ReLU), channels-first ----
        x_bf = x_ref[0, 0].astype(jnp.bfloat16)                 # (Cin, hw_tile)
        f = jnp.maximum(
            jnp.dot(w_ref[...], x_bf,
                    preferred_element_type=jnp.float32), 0.0)   # (Ccat, hwt) f32

        # ---- per-sample classify + refiner stand-in (alphas pre-folded) ----
        d_bf = d_ref[0].astype(jnp.bfloat16)                    # (1, Ccat)
        logits = jnp.dot(d_bf, f.astype(jnp.bfloat16),
                         preferred_element_type=jnp.float32) + bias_ref[0]  # (1, hwt)
        yv = y_ref[0, 0]                                        # (1, hw_tile)

        # ---- intersection_over_union partials (element-wise; reduce at end) ----
        pred = logits > 0.0            # == sigmoid(logits) > 0.5
        gt = yv > 0.5
        inter_s[...] += (pred & gt).astype(jnp.float32)
        union_s[...] += (pred | gt).astype(jnp.float32)

        # ---- BCE-with-logits (== BCELoss(sigmoid(z), y), numerically stable) ----
        bce = (jnp.maximum(logits, 0.0) - logits * yv
               + jnp.log(1.0 + jnp.exp(-jnp.abs(logits))))
        bce_s[...] += bce

        # ---- frame finalize: one cross-lane reduce per frame ----
        @pl.when(h == nh - 1)
        def _():
            i_tot = jnp.sum(inter_s[...], axis=1, keepdims=True)   # (1, 1)
            u_tot = jnp.sum(union_s[...], axis=1, keepdims=True)
            # union == 0 -> 0/0 -> NaN -> 1.0 in the reference (inf unreachable)
            iou = jnp.where(u_tot > 0.0, i_tot / u_tot, 1.0)
            iou_ref[0, 0] = jnp.broadcast_to(iou, (1, 128))
            b_tot = jnp.sum(bce_s[...], axis=1, keepdims=True)
            bce_ref[0, 0] = jnp.broadcast_to(b_tot, (1, 128))

    ws = _frame_working_set_bytes(hw_tile, Cin, Ccat)
    out_sds = jax.ShapeDtypeStruct((B, n_frames, 1, 128), jnp.float32)

    # TODO(synk): if profiling shows exposed DMA on the x/y streams at large
    # hw_tile, set pipeline_mode=pl.Buffered(3) on those two BlockSpecs.
    return pl.pallas_call(
        kernel,
        out_shape=(out_sds, out_sds),
        grid_spec=pltpu.PrefetchScalarGridSpec(
            num_scalar_prefetch=0,
            grid=(B, n_frames, n_hw),
            in_specs=[
                pl.BlockSpec((1, 1, Cin, hw_tile), lambda b, t, h: (t + 1, b, 0, h)),
                pl.BlockSpec((Ccat, Cin), lambda b, t, h: (0, 0)),
                pl.BlockSpec((1, 1, Ccat), lambda b, t, h: (b, 0, 0)),
                pl.BlockSpec((1, 1, 1, hw_tile), lambda b, t, h: (t + 1, b, 0, h)),
                pl.BlockSpec(memory_space=pltpu.MemorySpace.SMEM),
            ],
            out_specs=[
                pl.BlockSpec((1, 1, 1, 128), lambda b, t, h: (b, t, 0, 0)),
                pl.BlockSpec((1, 1, 1, 128), lambda b, t, h: (b, t, 0, 0)),
            ],
            scratch_shapes=[
                pltpu.VMEM((1, hw_tile), jnp.float32),   # intersection (per frame)
                pltpu.VMEM((1, hw_tile), jnp.float32),   # union (per frame)
                pltpu.VMEM((1, hw_tile), jnp.float32),   # bce sum (per frame)
            ],
        ),
        compiler_params=pltpu.CompilerParams(
            dimension_semantics=("parallel", "parallel", "arbitrary"),
            vmem_limit_bytes=_vmem_limit_bytes(ws)),
    )(x, wcat_t, dcat_scaled, y, bias)


# --------------------------------------------------------------------------
# TrainerModel.forward equivalent
# --------------------------------------------------------------------------
@partial(jax.jit, static_argnames=('hw_tile',))
def _trainer_forward_impl(images, labels, params, hw_tile):
    # images: [T, B, C, H, W]  (PyTorch NCHW)
    # labels: [T, B, 1, H, W]  binary masks (float)
    T, B, C, H, W = images.shape
    HW = H * W

    # free reshape (no transpose): channels-first, HW on the lane axis.
    # Images stay f32 (C=4 bf16 tiles would be sublane-padded anyway).
    x = images.reshape(T, B, C, HW).astype(jnp.float32)
    y = labels.reshape(T, B, 1, HW).astype(jnp.float32)

    w3, w4 = params['w3'], params['w4']
    c3, c4 = w3.shape[1], w4.shape[1]
    # fused + pre-transposed so the feature matmul is a plain (M,K)x(K,N)
    wcat_t = jnp.concatenate([w3, w4], axis=1).T.astype(jnp.bfloat16)  # (Ccat, Cin)

    # l3_initialize / l4_initialize (fused): per-sample discriminator filters
    dcat = disc_init(x[0], wcat_t, y[0], hw_tile=hw_tile)     # (B, 1, Ccat) f32

    # refiner stand-in: fold the alpha scales into the filters (tiny, plain JAX)
    refine = params['refine']
    scale = jnp.concatenate([jnp.full((c3,), refine[0], jnp.float32),
                             jnp.full((c4,), refine[1], jnp.float32)])
    dcat_scaled = dcat * scale                                 # (B, 1, Ccat)
    bias = refine[2:3].astype(jnp.float32)                     # (1,)

    # frames 1..T-1: features -> classify -> refine -> IoU + BCE
    iou_bt, bce_bt = frame_forward(x, wcat_t, dcat_scaled, y, bias,
                                   hw_tile=hw_tile)            # (B, T-1, 1, 128)

    n_frames = T - 1
    # nn.BCELoss(reduction='mean') per frame, then AverageMeter over frames
    loss = jnp.sum(bce_bt[:, :, 0, 0]) / (n_frames * B * HW)
    # acc.mean() over batch per frame, then averaged over frames
    acc = jnp.sum(iou_bt[:, :, 0, 0]) / (n_frames * B)
    return loss, acc


def trainer_forward(images, labels, params, hw_tile=None):
    H, W = images.shape[-2:]
    C = images.shape[2]
    ccat = params['w3'].shape[1] + params['w4'].shape[1]
    hw_tile = _choose_hw_tile(H * W, C, ccat, requested=hw_tile)
    loss, acc = _trainer_forward_impl(images, labels, params, hw_tile=hw_tile)
    # TODO(synk): .pth target-model disk cache not reproduced -> 0 cache hits;
    # loss.backward() (training step) not reproduced.
    return {
        'stats/loss': loss,                 # device scalar (no host sync here)
        'stats/accuracy': acc,
        'stats/fcache_hits_l3': 0,
        'stats/fcache_hits_l4': 0,
    }


if __name__ == "__main__":
    key = jax.random.PRNGKey(0)
    k1, k2, k3, k4 = jax.random.split(key, 4)

    T, B, C, H, W = 3, 2, 4, 16, 16
    C3, C4 = 64, 64          # fused feature width 128 -> lane/MXU aligned

    images = jax.random.normal(k1, (T, B, C, H, W), dtype=jnp.float32)
    labels = (jax.random.uniform(k2, (T, B, 1, H, W)) > 0.5).astype(jnp.float32)

    params = {
        'w3': 0.5 * jax.random.normal(k3, (C, C3), dtype=jnp.float32),
        'w4': 0.5 * jax.random.normal(k4, (C, C4), dtype=jnp.float32),
        # refiner stand-in: [alpha_l3, alpha_l4, bias]
        'refine': jnp.array([1.0, 1.0, 0.0], dtype=jnp.float32),
    }

    stats = trainer_forward(images, labels, params)
    jax.block_until_ready((stats['stats/loss'], stats['stats/accuracy']))

    assert all(k in stats for k in
               ('stats/loss', 'stats/accuracy',
                'stats/fcache_hits_l3', 'stats/fcache_hits_l4'))
    assert bool(jnp.isfinite(stats['stats/loss']))
    assert bool(jnp.isfinite(stats['stats/accuracy']))
    print("KERNEL_OK")
</pallas_src>

<mosaic_0001>
module attributes {stable_mosaic.version = 11 : i64} {
  func.func @kernel(%arg0: i32, %arg1: i32, %arg2: memref<1x4x256xf32, #tpu.memory_space<vmem>>, %arg3: memref<128x4xbf16, #tpu.memory_space<vmem>>, %arg4: memref<1x1x256xf32, #tpu.memory_space<vmem>>, %arg5: memref<1x1x128xf32, #tpu.memory_space<vmem>>) attributes {dimension_semantics = [#tpu.dimension_semantics<parallel>, #tpu.dimension_semantics<arbitrary>], iteration_bounds = array<i64: 2, 1>, scalar_prefetch = 0 : i64, scratch_operands = 0 : i64, tpu.core_type = #tpu.core_type<tc>, window_params = [{transform_indices = @transform_0, window_bounds = array<i64: 1, 4, 256>}, {pipeline_mode = #tpu.pipeline_mode<synchronous>, transform_indices = @transform_1, window_bounds = array<i64: 128, 4>}, {transform_indices = @transform_2, window_bounds = array<i64: 1, 1, 256>}, {transform_indices = @transform_3, window_bounds = array<i64: 1, 1, 128>}]} {
    %c0_i32 = arith.constant 0 : i32
    %0 = arith.cmpi eq, %arg1, %c0_i32 : i32
    %1 = arith.extui %0 : i1 to i32
    %c0_i32_0 = arith.constant 0 : i32
    %2 = arith.cmpi ne, %1, %c0_i32_0 : i32
    scf.if %2 {
      %cst_19 = arith.constant 0.000000e+00 : f32
      %27 = vector.broadcast %cst_19 : f32 to vector<1x1x128xf32>
      %c0_20 = arith.constant 0 : index
      %c0_21 = arith.constant 0 : index
      %c0_22 = arith.constant 0 : index
      %28 = vector.load %arg5[%c0_20, %c0_21, %c0_22] : memref<1x1x128xf32, #tpu.memory_space<vmem>>, vector<1x1x128xf32>
      tpu.vector_store %arg5[%c0_20, %c0_21, %c0_22], %27 {strides = array<i32>} : memref<1x1x128xf32, #tpu.memory_space<vmem>>, vector<1x1x128xf32>,
    } else {
    }
    %c0 = arith.constant 0 : index
    %c0_1 = arith.constant 0 : index
    %c0_2 = arith.constant 0 : index
    %3 = vector.load %arg2[%c0, %c0_1, %c0_2] : memref<1x4x256xf32, #tpu.memory_space<vmem>>, vector<1x4x256xf32>
    %4 = vector.shape_cast %3 : vector<1x4x256xf32> to vector<4x256xf32>
    %5 = arith.truncf %4 : vector<4x256xf32> to vector<4x256xbf16>
    %c0_3 = arith.constant 0 : index
    %c0_4 = arith.constant 0 : index
    %6 = vector.load %arg3[%c0_3, %c0_4] : memref<128x4xbf16, #tpu.memory_space<vmem>>, vector<128x4xbf16>
    %cst = arith.constant dense<0.000000e+00> : vector<128x256xf32>
    %7 = tpu.matmul %6, %5, %cst {dimension_numbers = #tpu.dot_dimension_numbers<[1], [0], [0], [1], [0, 0, 1, 1], [], []>} : vector<128x4xbf16>, vector<4x256xbf16>, vector<128x256xf32> -> vector<128x256xf32>
    %cst_5 = arith.constant 0.000000e+00 : f32
    %8 = vector.broadcast %cst_5 : f32 to vector<128x256xf32>
    %9 = arith.maximumf %7, %8 : vector<128x256xf32>
    %c0_6 = arith.constant 0 : index
    %c0_7 = arith.constant 0 : index
    %c0_8 = arith.constant 0 : index
    %10 = vector.load %arg4[%c0_6, %c0_7, %c0_8] : memref<1x1x256xf32, #tpu.memory_space<vmem>>, vector<1x1x256xf32>
    %11 = vector.shape_cast %10 : vector<1x1x256xf32> to vector<1x256xf32>
    %cst_9 = arith.constant 2.000000e+00 : f32
    %12 = vector.broadcast %cst_9 : f32 to vector<1x256xf32>
    %13 = arith.mulf %12, %11 : vector<1x256xf32>
    %cst_10 = arith.constant 1.000000e+00 : f32
    %14 = vector.broadcast %cst_10 : f32 to vector<1x256xf32>
    %15 = arith.subf %13, %14 : vector<1x256xf32>
    %16 = arith.truncf %15 : vector<1x256xf32> to vector<1x256xbf16>
    %17 = arith.truncf %9 : vector<128x256xf32> to vector<128x256xbf16>
    %cst_11 = arith.constant dense<0.000000e+00> : vector<1x128xf32>
    %18 = tpu.matmul %16, %17, %cst_11 {dimension_numbers = #tpu.dot_dimension_numbers<[1], [1], [0], [0], [0, 0, 1, 0], [], []>} : vector<1x256xbf16>, vector<128x256xbf16>, vector<1x128xf32> -> vector<1x128xf32>
    %c0_12 = arith.constant 0 : index
    %c0_13 = arith.constant 0 : index
    %c0_14 = arith.constant 0 : index
    %19 = vector.load %arg5[%c0_12, %c0_13, %c0_14] : memref<1x1x128xf32, #tpu.memory_space<vmem>>, vector<1x1x128xf32>
    %20 = vector.shape_cast %19 : vector<1x1x128xf32> to vector<1x128xf32>
    %cst_15 = arith.constant 3.906250e-03 : f32
    %21 = vector.broadcast %cst_15 : f32 to vector<1x128xf32>
    %22 = arith.mulf %18, %21 : vector<1x128xf32>
    %23 = arith.addf %20, %22 : vector<1x128xf32>
    %c0_16 = arith.constant 0 : index
    %c0_17 = arith.constant 0 : index
    %c0_18 = arith.constant 0 : index
    %24 = vector.load %arg5[%c0_16, %c0_17, %c0_18] : memref<1x1x128xf32, #tpu.memory_space<vmem>>, vector<1x1x128xf32>
    %25 = vector.shape_cast %24 : vector<1x1x128xf32> to vector<1x128xf32>
    %26 = vector.shape_cast %23 : vector<1x128xf32> to vector<1x1x128xf32>
    tpu.vector_store %arg5[%c0_16, %c0_17, %c0_18], %26 {strides = array<i32>} : memref<1x1x128xf32, #tpu.memory_space<vmem>>, vector<1x1x128xf32>,
    return
  }
  func.func @transform_0(%arg0: i32, %arg1: i32) -> (i32, i32, i32) {
    %c0_i32 = arith.constant 0 : i32
    %c0_i32_0 = arith.constant 0 : i32
    return %arg0, %c0_i32, %arg1 : i32, i32, i32
  }
  func.func @transform_1(%arg0: i32, %arg1: i32) -> (i32, i32) {
    %c0_i32 = arith.constant 0 : i32
    %c0_i32_0 = arith.constant 0 : i32
    %c0_i32_1 = arith.constant 0 : i32
    return %c0_i32, %c0_i32_0 : i32, i32
  }
  func.func @transform_2(%arg0: i32, %arg1: i32) -> (i32, i32, i32) {
    %c0_i32 = arith.constant 0 : i32
    %c0_i32_0 = arith.constant 0 : i32
    return %arg0, %c0_i32, %arg1 : i32, i32, i32
  }
  func.func @transform_3(%arg0: i32, %arg1: i32) -> (i32, i32, i32) {
    %c0_i32 = arith.constant 0 : i32
    %c0_i32_0 = arith.constant 0 : i32
    %c0_i32_1 = arith.constant 0 : i32
    return %arg0, %c0_i32, %c0_i32_0 : i32, i32, i32
  }
}

module attributes {stable_mosaic.version = 11 : i64} {
  func.func @kernel(%arg0: i32, %arg1: i32, %arg2: i32, %arg3: memref<1x1x4x256xf32, #tpu.memory_space<vmem>>, %arg4: memref<128x4xbf16, #tpu.memory_space<vmem>>, %arg5: memref<1x1x128xf32, #tpu.memory_space<vmem>>, %arg6: memref<1x1x1x256xf32, #tpu.memory_space<vmem>>, %arg7: memref<1xf32, #tpu.memory_space<smem>>, %arg8: memref<1x1x1x128xf32, #tpu.memory_space<vmem>>, %arg9: memref<1x1x1x128xf32, #tpu.memory_space<vmem>>, %arg10: memref<1x256xf32, #tpu.memory_space<vmem>>, %arg11: memref<1x256xf32, #tpu.memory_space<vmem>>, %arg12: memref<1x256xf32, #tpu.memory_space<vmem>>) attributes {dimension_semantics = [#tpu.dimension_semantics<parallel>, #tpu.dimension_semantics<parallel>, #tpu.dimension_semantics<arbitrary>], iteration_bounds = array<i64: 2, 2, 1>, scalar_prefetch = 0 : i64, scratch_operands = 3 : i64, tpu.core_type = #tpu.core_type<tc>, window_params = [{transform_indices = @transform_0, window_bounds = array<i64: 1, 1, 4, 256>}, {pipeline_mode = #tpu.pipeline_mode<synchronous>, transform_indices = @transform_1, window_bounds = array<i64: 128, 4>}, {transform_indices = @transform_2, window_bounds = array<i64: 1, 1, 128>}, {transform_indices = @transform_3, window_bounds = array<i64: 1, 1, 1, 256>}, {transform_indices = @transform_4, window_bounds = array<i64: 1>}, {transform_indices = @transform_5, window_bounds = array<i64: 1, 1, 1, 128>}, {transform_indices = @transform_6, window_bounds = array<i64: 1, 1, 1, 128>}]} {
    %c0_i32 = arith.constant 0 : i32
    %0 = arith.cmpi eq, %arg2, %c0_i32 : i32
    %1 = arith.extui %0 : i1 to i32
    %c0_i32_0 = arith.constant 0 : i32
    %2 = arith.cmpi ne, %1, %c0_i32_0 : i32
    scf.if %2 {
      %cst_35 = arith.constant 0.000000e+00 : f32
      %54 = vector.broadcast %cst_35 : f32 to vector<1x256xf32>
      %c0_36 = arith.constant 0 : index
      %c0_37 = arith.constant 0 : index
      %55 = vector.load %arg10[%c0_36, %c0_37] : memref<1x256xf32, #tpu.memory_space<vmem>>, vector<1x256xf32>
      tpu.vector_store %arg10[%c0_36, %c0_37], %54 {strides = array<i32>} : memref<1x256xf32, #tpu.memory_space<vmem>>, vector<1x256xf32>,
      %cst_38 = arith.constant 0.000000e+00 : f32
      %56 = vector.broadcast %cst_38 : f32 to vector<1x256xf32>
      %c0_39 = arith.constant 0 : index
      %c0_40 = arith.constant 0 : index
      %57 = vector.load %arg11[%c0_39, %c0_40] : memref<1x256xf32, #tpu.memory_space<vmem>>, vector<1x256xf32>
      tpu.vector_store %arg11[%c0_39, %c0_40], %56 {strides = array<i32>} : memref<1x256xf32, #tpu.memory_space<vmem>>, vector<1x256xf32>,
      %cst_41 = arith.constant 0.000000e+00 : f32
      %58 = vector.broadcast %cst_41 : f32 to vector<1x256xf32>
      %c0_42 = arith.constant 0 : index
      %c0_43 = arith.constant 0 : index
      %59 = vector.load %arg12[%c0_42, %c0_43] : memref<1x256xf32, #tpu.memory_space<vmem>>, vector<1x256xf32>
      tpu.vector_store %arg12[%c0_42, %c0_43], %58 {strides = array<i32>} : memref<1x256xf32, #tpu.memory_space<vmem>>, vector<1x256xf32>,
    } else {
    }
    %c0 = arith.constant 0 : index
    %c0_1 = arith.constant 0 : index
    %c0_2 = arith.constant 0 : index
    %c0_3 = arith.constant 0 : index
    %3 = vector.load %arg3[%c0, %c0_1, %c0_2, %c0_3] : memref<1x1x4x256xf32, #tpu.memory_space<vmem>>, vector<1x1x4x256xf32>
    %4 = vector.shape_cast %3 : vector<1x1x4x256xf32> to vector<4x256xf32>
    %5 = arith.truncf %4 : vector<4x256xf32> to vector<4x256xbf16>
    %c0_4 = arith.constant 0 : index
    %c0_5 = arith.constant 0 : index
    %6 = vector.load %arg4[%c0_4, %c0_5] : memref<128x4xbf16, #tpu.memory_space<vmem>>, vector<128x4xbf16>
    %cst = arith.constant dense<0.000000e+00> : vector<128x256xf32>
    %7 = tpu.matmul %6, %5, %cst {dimension_numbers = #tpu.dot_dimension_numbers<[1], [0], [0], [1], [0, 0, 1, 1], [], []>} : vector<128x4xbf16>, vector<4x256xbf16>, vector<128x256xf32> -> vector<128x256xf32>
    %cst_6 = arith.constant 0.000000e+00 : f32
    %8 = vector.broadcast %cst_6 : f32 to vector<128x256xf32>
    %9 = arith.maximumf %7, %8 : vector<128x256xf32>
    %c0_7 = arith.constant 0 : index
    %c0_8 = arith.constant 0 : index
    %c0_9 = arith.constant 0 : index
    %10 = vector.load %arg5[%c0_7, %c0_8, %c0_9] : memref<1x1x128xf32, #tpu.memory_space<vmem>>, vector<1x1x128xf32>
    %11 = vector.shape_cast %10 : vector<1x1x128xf32> to vector<1x128xf32>
    %12 = arith.truncf %11 : vector<1x128xf32> to vector<1x128xbf16>
    %13 = arith.truncf %9 : vector<128x256xf32> to vector<128x256xbf16>
    %cst_10 = arith.constant dense<0.000000e+00> : vector<1x256xf32>
    %14 = tpu.matmul %12, %13, %cst_10 {dimension_numbers = #tpu.dot_dimension_numbers<[1], [0], [0], [1], [0, 0, 1, 1], [], []>} : vector<1x128xbf16>, vector<128x256xbf16>, vector<1x256xf32> -> vector<1x256xf32>
    %c0_11 = arith.constant 0 : index
    %15 = memref.load %arg7[%c0_11] : memref<1xf32, #tpu.memory_space<smem>>
    %16 = vector.broadcast %15 : f32 to vector<1x256xf32>
    %17 = arith.addf %14, %16 : vector<1x256xf32>
    %c0_12 = arith.constant 0 : index
    %c0_13 = arith.constant 0 : index
    %c0_14 = arith.constant 0 : index
    %c0_15 = arith.constant 0 : index
    %18 = vector.load %arg6[%c0_12, %c0_13, %c0_14, %c0_15] : memref<1x1x1x256xf32, #tpu.memory_space<vmem>>, vector<1x1x1x256xf32>
    %19 = vector.shape_cast %18 : vector<1x1x1x256xf32> to vector<1x256xf32>
    %cst_16 = arith.constant 0.000000e+00 : f32
    %20 = vector.broadcast %cst_16 : f32 to vector<1x256xf32>
    %21 = arith.cmpf ogt, %17, %20 : vector<1x256xf32>
    %cst_17 = arith.constant 5.000000e-01 : f32
    %22 = vector.broadcast %cst_17 : f32 to vector<1x256xf32>
    %23 = arith.cmpf ogt, %19, %22 : vector<1x256xf32>
    %c0_18 = arith.constant 0 : index
    %c0_19 = arith.constant 0 : index
    %24 = vector.load %arg10[%c0_18, %c0_19] : memref<1x256xf32, #tpu.memory_space<vmem>>, vector<1x256xf32>
    %25 = arith.andi %21, %23 : vector<1x256xi1>
    %26 = arith.extui %25 : vector<1x256xi1> to vector<1x256xi32>
    %27 = arith.sitofp %26 : vector<1x256xi32> to vector<1x256xf32>
    %28 = arith.addf %24, %27 : vector<1x256xf32>
    %c0_20 = arith.constant 0 : index
    %c0_21 = arith.constant 0 : index
    %29 = vector.load %arg10[%c0_20, %c0_21] : memref<1x256xf32, #tpu.memory_space<vmem>>, vector<1x256xf32>
    tpu.vector_store %arg10[%c0_20, %c0_21], %28 {strides = array<i32>} : memref<1x256xf32, #tpu.memory_space<vmem>>, vector<1x256xf32>,
    %c0_22 = arith.constant 0 : index
    %c0_23 = arith.constant 0 : index
    %30 = vector.load %arg11[%c0_22, %c0_23] : memref<1x256xf32, #tpu.memory_space<vmem>>, vector<1x256xf32>
    %31 = arith.ori %21, %23 : vector<1x256xi1>
    %32 = arith.extui %31 : vector<1x256xi1> to vector<1x256xi32>
    %33 = arith.sitofp %32 : vector<1x256xi32> to vector<1x256xf32>
    %34 = arith.addf %30, %33 : vector<1x256xf32>
    %c0_24 = arith.constant 0 : index
    %c0_25 = arith.constant 0 : index
    %35 = vector.load %arg11[%c0_24, %c0_25] : memref<1x256xf32, #tpu.memory_space<vmem>>, vector<1x256xf32>
    tpu.vector_store %arg11[%c0_24, %c0_25], %34 {strides = array<i32>} : memref<1x256xf32, #tpu.memory_space<vmem>>, vector<1x256xf32>,
    %cst_26 = arith.constant 0.000000e+00 : f32
    %36 = vector.broadcast %cst_26 : f32 to vector<1x256xf32>
    %37 = arith.maximumf %17, %36 : vector<1x256xf32>
    %38 = arith.mulf %17, %19 : vector<1x256xf32>
    %39 = arith.subf %37, %38 : vector<1x256xf32>
    %40 = math.absf %17 : vector<1x256xf32>
    %cst_27 = arith.constant 0.000000e+00 : f32
    %41 = vector.broadcast %cst_27 : f32 to vector<1x256xf32>
    %42 = arith.subf %41, %40 : vector<1x256xf32>
    %43 = math.exp %42 : vector<1x256xf32>
    %cst_28 = arith.constant 1.000000e+00 : f32
    %44 = vector.broadcast %cst_28 : f32 to vector<1x256xf32>
    %45 = arith.addf %44, %43 : vector<1x256xf32>
    %46 = math.log %45 : vector<1x256xf32>
    %47 = arith.addf %39, %46 : vector<1x256xf32>
    %c0_29 = arith.constant 0 : index
    %c0_30 = arith.constant 0 : index
    %48 = vector.load %arg12[%c0_29, %c0_30] : memref<1x256xf32, #tpu.memory_space<vmem>>, vector<1x256xf32>
    %49 = arith.addf %48, %47 : vector<1x256xf32>
    %c0_31 = arith.constant 0 : index
    %c0_32 = arith.constant 0 : index
    %50 = vector.load %arg12[%c0_31, %c0_32] : memref<1x256xf32, #tpu.memory_space<vmem>>, vector<1x256xf32>
    tpu.vector_store %arg12[%c0_31, %c0_32], %49 {strides = array<i32>} : memref<1x256xf32, #tpu.memory_space<vmem>>, vector<1x256xf32>,
    %c0_i32_33 = arith.constant 0 : i32
    %51 = arith.cmpi eq, %arg2, %c0_i32_33 : i32
    %52 = arith.extui %51 : i1 to i32
    %c0_i32_34 = arith.constant 0 : i32
    %53 = arith.cmpi ne, %52, %c0_i32_34 : i32
    scf.if %53 {
      %c0_35 = arith.constant 0 : index
      %c0_36 = arith.constant 0 : index
      %54 = vector.load %arg10[%c0_35, %c0_36] : memref<1x256xf32, #tpu.memory_space<vmem>>, vector<1x256xf32>
      %cst_37 = arith.constant dense<0.000000e+00> : vector<1xf32>
      %55 = vector.multi_reduction <add>, %54, %cst_37 [1] : vector<1x256xf32> to vector<1xf32>
      %56 = vector.shape_cast %55 : vector<1xf32> to vector<1x1xf32>
      %c0_38 = arith.constant 0 : index
      %c0_39 = arith.constant 0 : index
      %57 = vector.load %arg11[%c0_38, %c0_39] : memref<1x256xf32, #tpu.memory_space<vmem>>, vector<1x256xf32>
      %cst_40 = arith.constant dense<0.000000e+00> : vector<1xf32>
      %58 = vector.multi_reduction <add>, %57, %cst_40 [1] : vector<1x256xf32> to vector<1xf32>
      %59 = vector.shape_cast %58 : vector<1xf32> to vector<1x1xf32>
      %cst_41 = arith.constant 0.000000e+00 : f32
      %60 = vector.broadcast %cst_41 : f32 to vector<1x1xf32>
      %61 = arith.cmpf ogt, %59, %60 : vector<1x1xf32>
      %62 = arith.divf %56, %59 : vector<1x1xf32>
      %cst_42 = arith.constant 1.000000e+00 : f32
      %63 = vector.broadcast %cst_42 : f32 to vector<1x1xf32>
      %64 = arith.select %61, %62, %63 : vector<1x1xi1>, vector<1x1xf32>
      %65 = vector.shape_cast %64 : vector<1x1xf32> to vector<1x1xf32>
      %66 = vector.broadcast %65 : vector<1x1xf32> to vector<1x128xf32>
      %c0_43 = arith.constant 0 : index
      %c0_44 = arith.constant 0 : index
      %c0_45 = arith.constant 0 : index
      %c0_46 = arith.constant 0 : index
      %67 = vector.load %arg8[%c0_43, %c0_44, %c0_45, %c0_46] : memref<1x1x1x128xf32, #tpu.memory_space<vmem>>, vector<1x1x1x128xf32>
      %68 = vector.shape_cast %67 : vector<1x1x1x128xf32> to vector<1x128xf32>
      %69 = vector.shape_cast %66 : vector<1x128xf32> to vector<1x1x1x128xf32>
      tpu.vector_store %arg8[%c0_43, %c0_44, %c0_45, %c0_46], %69 {strides = array<i32>} : memref<1x1x1x128xf32, #tpu.memory_space<vmem>>, vector<1x1x1x128xf32>,
      %c0_47 = arith.constant 0 : index
      %c0_48 = arith.constant 0 : index
      %70 = vector.load %arg12[%c0_47, %c0_48] : memref<1x256xf32, #tpu.memory_space<vmem>>, vector<1x256xf32>
      %cst_49 = arith.constant dense<0.000000e+00> : vector<1xf32>
      %71 = vector.multi_reduction <add>, %70, %cst_49 [1] : vector<1x256xf32> to vector<1xf32>
      %72 = vector.shape_cast %71 : vector<1xf32> to vector<1x1xf32>
      %73 = vector.shape_cast %72 : vector<1x1xf32> to vector<1x1xf32>
      %74 = vector.broadcast %73 : vector<1x1xf32> to vector<1x128xf32>
      %c0_50 = arith.constant 0 : index
      %c0_51 = arith.constant 0 : index
      %c0_52 = arith.constant 0 : index
      %c0_53 = arith.constant 0 : index
      %75 = vector.load %arg9[%c0_50, %c0_51, %c0_52, %c0_53] : memref<1x1x1x128xf32, #tpu.memory_space<vmem>>, vector<1x1x1x128xf32>
      %76 = vector.shape_cast %75 : vector<1x1x1x128xf32> to vector<1x128xf32>
      %77 = vector.shape_cast %74 : vector<1x128xf32> to vector<1x1x1x128xf32>
      tpu.vector_store %arg9[%c0_50, %c0_51, %c0_52, %c0_53], %77 {strides = array<i32>} : memref<1x1x1x128xf32, #tpu.memory_space<vmem>>, vector<1x1x1x128xf32>,
    } else {
    }
    return
  }
  func.func @transform_0(%arg0: i32, %arg1: i32, %arg2: i32) -> (i32, i32, i32, i32) {
    %c1_i32 = arith.constant 1 : i32
    %0 = arith.addi %arg1, %c1_i32 : i32
    %c0_i32 = arith.constant 0 : i32
    %c0_i32_0 = arith.constant 0 : i32
    return %0, %arg0, %c0_i32, %arg2 : i32, i32, i32, i32
  }
  func.func @transform_1(%arg0: i32, %arg1: i32, %arg2: i32) -> (i32, i32) {
    %c0_i32 = arith.constant 0 : i32
    %c0_i32_0 = arith.constant 0 : i32
    %c0_i32_1 = arith.constant 0 : i32
    return %c0_i32, %c0_i32_0 : i32, i32
  }
  func.func @transform_2(%arg0: i32, %arg1: i32, %arg2: i32) -> (i32, i32, i32) {
    %c0_i32 = arith.constant 0 : i32
    %c0_i32_0 = arith.constant 0 : i32
    %c0_i32_1 = arith.constant 0 : i32
    return %arg0, %c0_i32, %c0_i32_0 : i32, i32, i32
  }
  func.func @transform_3(%arg0: i32, %arg1: i32, %arg2: i32) -> (i32, i32, i32, i32) {
    %c1_i32 = arith.constant 1 : i32
    %0 = arith.addi %arg1, %c1_i32 : i32
    %c0_i32 = arith.constant 0 : i32
    %c0_i32_0 = arith.constant 0 : i32
    return %0, %arg0, %c0_i32, %arg2 : i32, i32, i32, i32
  }
  func.func @transform_4(%arg0: i32, %arg1: i32, %arg2: i32) -> i32 {
    %c0_i32 = arith.constant 0 : i32
    %c0_i32_0 = arith.constant 0 : i32
    return %c0_i32 : i32
  }
  func.func @transform_5(%arg0: i32, %arg1: i32, %arg2: i32) -> (i32, i32, i32, i32) {
    %c0_i32 = arith.constant 0 : i32
    %c0_i32_0 = arith.constant 0 : i32
    %c0_i32_1 = arith.constant 0 : i32
    return %arg0, %arg1, %c0_i32, %c0_i32_0 : i32, i32, i32, i32
  }
  func.func @transform_6(%arg0: i32, %arg1: i32, %arg2: i32) -> (i32, i32, i32, i32) {
    %c0_i32 = arith.constant 0 : i32
    %c0_i32_0 = arith.constant 0 : i32
    %c0_i32_1 = arith.constant 0 : i32
    return %arg0, %arg1, %c0_i32, %c0_i32_0 : i32, i32, i32, i32
  }
}

</mosaic_0001>

<llo_original>
// kernel: squeeze.7
$region0: #{squeeze.7}
  %s0 = inlined_call_operand.vmem [shape: f32[1,2,1,16,16], index: 0, kind: input, shape index: {}]
  %s1 = inlined_call_operand.vmem [shape: f32[2,1,256], index: 1, kind: output, shape index: {}]
  $region1: #{squeeze.7} parent=0
    #allocation0 [shape = 'u8[16384]{0}', space=vmem, size = 0x4000, scoped, tag = 'scoped mem for output reshape']
    %v2 = vld [vmem:[%s0] ss:$8 sm:$0xf]
    %vm3 = vcmask 130048
    %4 = vst.msk [vmem:[#allocation0] ss:$8 sm:$0xf] %vm3, %v2
    %s5 = scalar_lea.vmem %s0, 7
    %v6 = vld [vmem:[%s5] ss:$8 sm:$0xf]
    %7 = vrot.lane.b32.xlu0 %v6, 112
    %v8 = vpop.permute.xlu0 %7
    %vm9 = vcmask 1048448
    %10 = vst.msk [vmem:[#allocation0] ss:$8 sm:$0xf] %vm9, %v8
    %s11 = scalar_lea.vmem %s0, 6
    %v12 = vld [vmem:[%s11] ss:$8 sm:$0xf]
    %13 = vrot.lane.b32.xlu0 %v12, 96
    %v14 = vpop.permute.xlu0 %13
    %vm15 = vcmask 917248
    %16 = vst.msk [vmem:[#allocation0] ss:$8 sm:$0xf] %vm15, %v14
    %s17 = scalar_lea.vmem %s0, 5
    %v18 = vld [vmem:[%s17] ss:$8 sm:$0xf]
    %19 = vrot.lane.b32.xlu0 %v18, 80
    %v20 = vpop.permute.xlu0 %19
    %vm21 = vcmask 786048
    %22 = vst.msk [vmem:[#allocation0] ss:$8 sm:$0xf] %vm21, %v20
    %s23 = scalar_lea.vmem %s0, 4
    %v24 = vld [vmem:[%s23] ss:$8 sm:$0xf]
    %25 = vrot.lane.b32.xlu0 %v24, 64
    %v26 = vpop.permute.xlu0 %25
    %vm27 = vcmask 654848
    %28 = vst.msk [vmem:[#allocation0] ss:$8 sm:$0xf] %vm27, %v26
    %s29 = scalar_lea.vmem %s0, 3
    %v30 = vld [vmem:[%s29] ss:$8 sm:$0xf]
    %31 = vrot.lane.b32.xlu0 %v30, 48
    %v32 = vpop.permute.xlu0 %31
    %vm33 = vcmask 523648
    %34 = vst.msk [vmem:[#allocation0] ss:$8 sm:$0xf] %vm33, %v32
    %s35 = scalar_lea.vmem %s0, 2
    %v36 = vld [vmem:[%s35] ss:$8 sm:$0xf]
    %37 = vrot.lane.b32.xlu0 %v36, 32
    %v38 = vpop.permute.xlu0 %37
    %vm39 = vcmask 392448
    %40 = vst.msk [vmem:[#allocation0] ss:$8 sm:$0xf] %vm39, %v38
    %s41 = scalar_lea.vmem %s0, 1
    %v42 = vld [vmem:[%s41] ss:$8 sm:$0xf]
    %43 = vrot.lane.b32.xlu0 %v42, 16
    %v44 = vpop.permute.xlu0 %43
    %vm45 = vcmask 261248
    %46 = vst.msk [vmem:[#allocation0] ss:$8 sm:$0xf] %vm45, %v44
    %s48 = sshllo.u32 0, 1
    %v50 = vld [vmem:[#allocation0] sm:%s48]
    %s51 = sshllo.u32 0, 1
    %52 = vst [vmem:[%s1] sm:%s51] %v50
    %s53 = scalar_lea.vmem [#allocation0], 8
    %v54 = vld [vmem:[%s53] sm:%s48]
    %s55 = sshllo.u32 0, 1
    %s56 = scalar_lea.vmem %s1, 1
    %57 = vst [vmem:[%s56] sm:%s55] %v54
    %s58 = scalar_lea.vmem [#allocation0], 16
    %v59 = vld [vmem:[%s58] sm:%s48]
    %s60 = sshllo.u32 0, 1
    %s61 = smul.addr 1, 2
    %s62 = scalar_lea.vmem %s1, %s61
    %63 = vst [vmem:[%s62] sm:%s60] %v59
    %s64 = scalar_lea.vmem [#allocation0], 24
    %v65 = vld [vmem:[%s64] sm:%s48]
    %s66 = sshllo.u32 0, 1
    %s67 = smul.addr 1, 3
    %s68 = scalar_lea.vmem %s1, %s67
    %69 = vst [vmem:[%s68] sm:%s66] %v65

// kernel: squeeze.6
$region0: #{squeeze.6}
  %s0 = inlined_call_operand.vmem [shape: f32[1,2,4,16,16], index: 0, kind: input, shape index: {}]
  %s1 = inlined_call_operand.vmem [shape: f32[2,4,256], index: 1, kind: output, shape index: {}]
  $region1: #{squeeze.6} parent=0
    #allocation0 [shape = 'u8[16384]{0}', space=vmem, size = 0x4000, scoped, tag = 'scoped mem for output reshape']
    %v2 = vld [vmem:[%s0] ss:$8 sm:$0xf]
    %v3 = vld [vmem:[%s0] ss:$8 sm:$0xf0]
    %vm4 = vcmask 1047556
    %v5 = vsel %vm4, %v3, %v2
    %vm6 = vcmask 130048
    %7 = vst.msk [vmem:[#allocation0] ss:$8 sm:$0x3] %vm6, %v5
    %s8 = scalar_lea.vmem [#allocation0], 4294967281
    %9 = vst.msk [vmem:[%s8] ss:$8 sm:$0xc] %vm6, %v5
    %s10 = scalar_lea.vmem [#allocation0], 4294967266
    %11 = vst.msk [vmem:[%s10] ss:$8 sm:$0x30] %vm6, %v5
    %s12 = scalar_lea.vmem [#allocation0], 4294967251
    %13 = vst.msk [vmem:[%s12] ss:$8 sm:$0xc0] %vm6, %v5
    %s14 = scalar_lea.vmem %s0, 64
    %v15 = vld [vmem:[%s14] ss:$8 sm:$0xf]
    %s16 = scalar_lea.vmem %s0, 64
    %v17 = vld [vmem:[%s16] ss:$8 sm:$0xf0]
    %vm18 = vcmask 1047556
    %v19 = vsel %vm18, %v17, %v15
    %vm20 = vcmask 130048
    %s21 = scalar_lea.vmem [#allocation0], 16
    %22 = vst.msk [vmem:[%s21] ss:$8 sm:$0x3] %vm20, %v19
    %s23 = scalar_lea.vmem [#allocation0], 1
    %24 = vst.msk [vmem:[%s23] ss:$8 sm:$0xc] %vm20, %v19
    %s25 = scalar_lea.vmem [#allocation0], 4294967282
    %26 = vst.msk [vmem:[%s25] ss:$8 sm:$0x30] %vm20, %v19
    %s27 = scalar_lea.vmem [#allocation0], 4294967267
    %28 = vst.msk [vmem:[%s27] ss:$8 sm:$0xc0] %vm20, %v19
    %s29 = scalar_lea.vmem %s0, 7
    %s30 = smov 3
    %v31 = vld [vmem:[%s29] ss:$16 sm:%s30]
    %s32 = scalar_lea.vmem %s0, 7
    %s33 = smov 12
    %v34 = vld [vmem:[%s32] ss:$16 sm:%s33]
    %vm35 = vcmask 1043458
    %v36 = vsel %vm35, %v34, %v31
    %s37 = scalar_lea.vmem %s0, 4294967247
    %s38 = smov 48
    %v39 = vld [vmem:[%s37] ss:$16 sm:%s38]
    %vm40 = vcmask 1045508
    %v41 = vsel %vm40, %v39, %v36
    %s42 = scalar_lea.vmem %s0, 4294967247
    %s43 = smov 192
    %v44 = vld [vmem:[%s42] ss:$16 sm:%s43]
    %vm45 = vcmask 1047558
    %v46 = vsel %vm45, %v44, %v41
    %47 = vrot.lane.b32.xlu0 %v46, 112
    %v48 = vpop.permute.xlu0 %47
    %vm49 = vcmask 1048448
    %50 = vst.msk [vmem:[#allocation0] sm:$0xf] %vm49, %v48
    %s51 = scalar_lea.vmem [#allocation0], 4
    %52 = vst.msk [vmem:[%s51] sm:$0xf0] %vm49, %v48
    %s53 = scalar_lea.vmem %s0, 71
    %s54 = smov 3
    %v55 = vld [vmem:[%s53] ss:$16 sm:%s54]
    %s56 = scalar_lea.vmem %s0, 71
    %s57 = smov 12
    %v58 = vld [vmem:[%s56] ss:$16 sm:%s57]
    %vm59 = vcmask 1043458
    %v60 = vsel %vm59, %v58, %v55
    %s61 = scalar_lea.vmem %s0, 15
    %s62 = smov 48
    %v63 = vld [vmem:[%s61] ss:$16 sm:%s62]
    %vm64 = vcmask 1045508
    %v65 = vsel %vm64, %v63, %v60
    %s66 = scalar_lea.vmem %s0, 15
    %s67 = smov 192
    %v68 = vld [vmem:[%s66] ss:$16 sm:%s67]
    %vm69 = vcmask 1047558
    %v70 = vsel %vm69, %v68, %v65
    %71 = vrot.lane.b32.xlu0 %v70, 112
    %v72 = vpop.permute.xlu0 %71
    %vm73 = vcmask 1048448
    %s74 = scalar_lea.vmem [#allocation0], 16
    %75 = vst.msk [vmem:[%s74] sm:$0xf] %vm73, %v72
    %s76 = scalar_lea.vmem [#allocation0], 20
    %77 = vst.msk [vmem:[%s76] sm:$0xf0] %vm73, %v72
    %s78 = scalar_lea.vmem %s0, 6
    %s79 = smov 3
    %v80 = vld [vmem:[%s78] ss:$16 sm:%s79]
    %s81 = scalar_lea.vmem %s0, 6
    %s82 = smov 12
    %v83 = vld [vmem:[%s81] ss:$16 sm:%s82]
    %vm84 = vcmask 1043458
    %v85 = vsel %vm84, %v83, %v80
    %s86 = scalar_lea.vmem %s0, 4294967246
    %s87 = smov 48
    %v88 = vld [vmem:[%s86] ss:$16 sm:%s87]
    %vm89 = vcmask 1045508
    %v90 = vsel %vm89, %v88, %v85
    %s91 = scalar_lea.vmem %s0, 4294967246
    %s92 = smov 192
    %v93 = vld [vmem:[%s91] ss:$16 sm:%s92]
    %vm94 = vcmask 1047558
    %v95 = vsel %vm94, %v93, %v90
    %96 = vrot.lane.b32.xlu0 %v95, 96
    %v97 = vpop.permute.xlu0 %96
    %vm98 = vcmask 917248
    %99 = vst.msk [vmem:[#allocation0] sm:$0xf] %vm98, %v97
    %s100 = scalar_lea.vmem [#allocation0], 4
    %101 = vst.msk [vmem:[%s100] sm:$0xf0] %vm98, %v97
    %s102 = scalar_lea.vmem %s0, 70
    %s103 = smov 3
    %v104 = vld [vmem:[%s102] ss:$16 sm:%s103]
    %s105 = scalar_lea.vmem %s0, 70
    %s106 = smov 12
    %v107 = vld [vmem:[%s105] ss:$16 sm:%s106]
    %vm108 = vcmask 1043458
    %v109 = vsel %vm108, %v107, %v104
    %s110 = scalar_lea.vmem %s0, 14
    %s111 = smov 48
    %v112 = vld [vmem:[%s110] ss:$16 sm:%s111]
    %vm113 = vcmask 1045508
    %v114 = vsel %vm113, %v112, %v109
    %s115 = scalar_lea.vmem %s0, 14
    %s116 = smov 192
    %v117 = vld [vmem:[%s115] ss:$16 sm:%s116]
    %vm118 = vcmask 1047558
    %v119 = vsel %vm118, %v117, %v114
    %120 = vrot.lane.b32.xlu0 %v119, 96
    %v121 = vpop.permute.xlu0 %120
    %vm122 = vcmask 917248
    %s123 = scalar_lea.vmem [#allocation0], 16
    %124 = vst.msk [vmem:[%s123] sm:$0xf] %vm122, %v121
    %s125 = scalar_lea.vmem [#allocation0], 20
    %126 = vst.msk [vmem:[%s125] sm:$0xf0] %vm122, %v121
    %s127 = scalar_lea.vmem %s0, 5
    %s128 = smov 3
    %v129 = vld [vmem:[%s127] ss:$16 sm:%s128]
    %s130 = scalar_lea.vmem %s0, 5
    %s131 = smov 12
    %v132 = vld [vmem:[%s130] ss:$16 sm:%s131]
    %vm133 = vcmask 1043458
    %v134 = vsel %vm133, %v132, %v129
    %s135 = scalar_lea.vmem %s0, 4294967245
    %s136 = smov 48
    %v137 = vld [vmem:[%s135] ss:$16 sm:%s136]
    %vm138 = vcmask 1045508
    %v139 = vsel %vm138, %v137, %v134
    %s140 = scalar_lea.vmem %s0, 4294967245
    %s141 = smov 192
    %v142 = vld [vmem:[%s140] ss:$16 sm:%s141]
    %vm143 = vcmask 1047558
    %v144 = vsel %vm143, %v142, %v139
    %145 = vrot.lane.b32.xlu0 %v144, 80
    %v146 = vpop.permute.xlu0 %145
    %vm147 = vcmask 786048
    %148 = vst.msk [vmem:[#allocation0] sm:$0xf] %vm147, %v146
    %s149 = scalar_lea.vmem [#allocation0], 4
    %150 = vst.msk [vmem:[%s149] sm:$0xf0] %vm147, %v146
    %s151 = scalar_lea.vmem %s0, 69
    %s152 = smov 3
    %v153 = vld [vmem:[%s151] ss:$16 sm:%s152]
    %s154 = scalar_lea.vmem %s0, 69
    %s155 = smov 12
    %v156 = vld [vmem:[%s154] ss:$16 sm:%s155]
    %vm157 = vcmask 1043458
    %v158 = vsel %vm157, %v156, %v153
    %s159 = scalar_lea.vmem %s0, 13
    %s160 = smov 48
    %v161 = vld [vmem:[%s159] ss:$16 sm:%s160]
    %vm162 = vcmask 1045508
    %v163 = vsel %vm162, %v161, %v158
    %s164 = scalar_lea.vmem %s0, 13
    %s165 = smov 192
    %v166 = vld [vmem:[%s164] ss:$16 sm:%s165]
    %vm167 = vcmask 1047558
    %v168 = vsel %vm167, %v166, %v163
    %169 = vrot.lane.b32.xlu0 %v168, 80
    %v170 = vpop.permute.xlu0 %169
    %vm171 = vcmask 786048
    %s172 = scalar_lea.vmem [#allocation0], 16
    %173 = vst.msk [vmem:[%s172] sm:$0xf] %vm171, %v170
    %s174 = scalar_lea.vmem [#allocation0], 20
    %175 = vst.msk [vmem:[%s174] sm:$0xf0] %vm171, %v170
    %s176 = scalar_lea.vmem %s0, 4
    %s177 = smov 3
    %v178 = vld [vmem:[%s176] ss:$16 sm:%s177]
    %s179 = scalar_lea.vmem %s0, 4
    %s180 = smov 12
    %v181 = vld [vmem:[%s179] ss:$16 sm:%s180]
    %vm182 = vcmask 1043458
    %v183 = vsel %vm182, %v181, %v178
    %s184 = scalar_lea.vmem %s0, 4294967244
    %s185 = smov 48
    %v186 = vld [vmem:[%s184] ss:$16 sm:%s185]
    %vm187 = vcmask 1045508
    %v188 = vsel %vm187, %v186, %v183
    %s189 = scalar_lea.vmem %s0, 4294967244
    %s190 = smov 192
    %v191 = vld [vmem:[%s189] ss:$16 sm:%s190]
    %vm192 = vcmask 1047558
    %v193 = vsel %vm192, %v191, %v188
    %194 = vrot.lane.b32.xlu0 %v193, 64
    %v195 = vpop.permute.xlu0 %194
    %vm196 = vcmask 654848
    %197 = vst.msk [vmem:[#allocation0] sm:$0xf] %vm196, %v195
    %s198 = scalar_lea.vmem [#allocation0], 4
    %199 = vst.msk [vmem:[%s198] sm:$0xf0] %vm196, %v195
    %s200 = scalar_lea.vmem %s0, 68
    %s201 = smov 3
    %v202 = vld [vmem:[%s200] ss:$16 sm:%s201]
    %s203 = scalar_lea.vmem %s0, 68
    %s204 = smov 12
    %v205 = vld [vmem:[%s203] ss:$16 sm:%s204]
    %vm206 = vcmask 1043458
    %v207 = vsel %vm206, %v205, %v202
    %s208 = scalar_lea.vmem %s0, 12
    %s209 = smov 48
    %v210 = vld [vmem:[%s208] ss:$16 sm:%s209]
    %vm211 = vcmask 1045508
    %v212 = vsel %vm211, %v210, %v207
    %s213 = scalar_lea.vmem %s0, 12
    %s214 = smov 192
    %v215 = vld [vmem:[%s213] ss:$16 sm:%s214]
    %vm216 = vcmask 1047558
    %v217 = vsel %vm216, %v215, %v212
    %218 = vrot.lane.b32.xlu0 %v217, 64
    %v219 = vpop.permute.xlu0 %218
    %vm220 = vcmask 654848
    %s221 = scalar_lea.vmem [#allocation0], 16
    %222 = vst.msk [vmem:[%s221] sm:$0xf] %vm220, %v219
    %s223 = scalar_lea.vmem [#allocation0], 20
    %224 = vst.msk [vmem:[%s223] sm:$0xf0] %vm220, %v219
    %s225 = scalar_lea.vmem %s0, 3
    %s226 = smov 3
    %v227 = vld [vmem:[%s225] ss:$16 sm:%s226]
    %s228 = scalar_lea.vmem %s0, 3
    %s229 = smov 12
    %v230 = vld [vmem:[%s228] ss:$16 sm:%s229]
    %vm231 = vcmask 1043458
    %v232 = vsel %vm231, %v230, %v227
    %s233 = scalar_lea.vmem %s0, 4294967243
    %s234 = smov 48
    %v235 = vld [vmem:[%s233] ss:$16 sm:%s234]
    %vm236 = vcmask 1045508
    %v237 = vsel %vm236, %v235, %v232
    %s238 = scalar_lea.vmem %s0, 4294967243
    %s239 = smov 192
    %v240 = vld [vmem:[%s238] ss:$16 sm:%s239]
    %vm241 = vcmask 1047558
    %v242 = vsel %vm241, %v240, %v237
    %243 = vrot.lane.b32.xlu0 %v242, 48
    %v244 = vpop.permute.xlu0 %243
    %vm245 = vcmask 523648
    %246 = vst.msk [vmem:[#allocation0] sm:$0xf] %vm245, %v244
    %s247 = scalar_lea.vmem [#allocation0], 4
    %248 = vst.msk [vmem:[%s247] sm:$0xf0] %vm245, %v244
    %s249 = scalar_lea.vmem %s0, 67
    %s250 = smov 3
    %v251 = vld [vmem:[%s249] ss:$16 sm:%s250]
    %s252 = scalar_lea.vmem %s0, 67
    %s253 = smov 12
    %v254 = vld [vmem:[%s252] ss:$16 sm:%s253]
    %vm255 = vcmask 1043458
    %v256 = vsel %vm255, %v254, %v251
    %s257 = scalar_lea.vmem %s0, 11
    %s258 = smov 48
    %v259 = vld [vmem:[%s257] ss:$16 sm:%s258]
    %vm260 = vcmask 1045508
    %v261 = vsel %vm260, %v259, %v256
    %s262 = scalar_lea.vmem %s0, 11
    %s263 = smov 192
    %v264 = vld [vmem:[%s262] ss:$16 sm:%s263]
    %vm265 = vcmask 1047558
    %v266 = vsel %vm265, %v264, %v261
    %267 = vrot.lane.b32.xlu0 %v266, 48
    %v268 = vpop.permute.xlu0 %267
    %vm269 = vcmask 523648
    %s270 = scalar_lea.vmem [#allocation0], 16
    %271 = vst.msk [vmem:[%s270] sm:$0xf] %vm269, %v268
    %s272 = scalar_lea.vmem [#allocation0], 20
    %273 = vst.msk [vmem:[%s272] sm:$0xf0] %vm269, %v268
    %s274 = scalar_lea.vmem %s0, 2
    %s275 = smov 3
    %v276 = vld [vmem:[%s274] ss:$16 sm:%s275]
    %s277 = scalar_lea.vmem %s0, 2
    %s278 = smov 12
    %v279 = vld [vmem:[%s277] ss:$16 sm:%s278]
    %vm280 = vcmask 1043458
    %v281 = vsel %vm280, %v279, %v276
    %s282 = scalar_lea.vmem %s0, 4294967242
    %s283 = smov 48
    %v284 = vld [vmem:[%s282] ss:$16 sm:%s283]
    %vm285 = vcmask 1045508
    %v286 = vsel %vm285, %v284, %v281
    %s287 = scalar_lea.vmem %s0, 4294967242
    %s288 = smov 192
    %v289 = vld [vmem:[%s287] ss:$16 sm:%s288]
    %vm290 = vcmask 1047558
    %v291 = vsel %vm290, %v289, %v286
    %292 = vrot.lane.b32.xlu0 %v291, 32
    %v293 = vpop.permute.xlu0 %292
    %vm294 = vcmask 392448
    %295 = vst.msk [vmem:[#allocation0] sm:$0xf] %vm294, %v293
    %s296 = scalar_lea.vmem [#allocation0], 4
    %297 = vst.msk [vmem:[%s296] sm:$0xf0] %vm294, %v293
    %s298 = scalar_lea.vmem %s0, 66
    %s299 = smov 3
    %v300 = vld [vmem:[%s298] ss:$16 sm:%s299]
    %s301 = scalar_lea.vmem %s0, 66
    %s302 = smov 12
    %v303 = vld [vmem:[%s301] ss:$16 sm:%s302]
    %vm304 = vcmask 1043458
    %v305 = vsel %vm304, %v303, %v300
    %s306 = scalar_lea.vmem %s0, 10
    %s307 = smov 48
    %v308 = vld [vmem:[%s306] ss:$16 sm:%s307]
    %vm309 = vcmask 1045508
    %v310 = vsel %vm309, %v308, %v305
    %s311 = scalar_lea.vmem %s0, 10
    %s312 = smov 192
    %v313 = vld [vmem:[%s311] ss:$16 sm:%s312]
    %vm314 = vcmask 1047558
    %v315 = vsel %vm314, %v313, %v310
    %316 = vrot.lane.b32.xlu0 %v315, 32
    %v317 = vpop.permute.xlu0 %316
    %vm318 = vcmask 392448
    %s319 = scalar_lea.vmem [#allocation0], 16
    %320 = vst.msk [vmem:[%s319] sm:$0xf] %vm318, %v317
    %s321 = scalar_lea.vmem [#allocation0], 20
    %322 = vst.msk [vmem:[%s321] sm:$0xf0] %vm318, %v317
    %s323 = scalar_lea.vmem %s0, 1
    %s324 = smov 3
    %v325 = vld [vmem:[%s323] ss:$16 sm:%s324]
    %s326 = scalar_lea.vmem %s0, 1
    %s327 = smov 12
    %v328 = vld [vmem:[%s326] ss:$16 sm:%s327]
    %vm329 = vcmask 1043458
    %v330 = vsel %vm329, %v328, %v325
    %s331 = scalar_lea.vmem %s0, 4294967241
    %s332 = smov 48
    %v333 = vld [vmem:[%s331] ss:$16 sm:%s332]
    %vm334 = vcmask 1045508
    %v335 = vsel %vm334, %v333, %v330
    %s336 = scalar_lea.vmem %s0, 4294967241
    %s337 = smov 192
    %v338 = vld [vmem:[%s336] ss:$16 sm:%s337]
    %vm339 = vcmask 1047558
    %v340 = vsel %vm339, %v338, %v335
    %341 = vrot.lane.b32.xlu0 %v340, 16
    %v342 = vpop.permute.xlu0 %341
    %vm343 = vcmask 261248
    %344 = vst.msk [vmem:[#allocation0] sm:$0xf] %vm343, %v342
    %s345 = scalar_lea.vmem [#allocation0], 4
    %346 = vst.msk [vmem:[%s345] sm:$0xf0] %vm343, %v342
    %s347 = scalar_lea.vmem %s0, 65
    %s348 = smov 3
    %v349 = vld [vmem:[%s347] ss:$16 sm:%s348]
    %s350 = scalar_lea.vmem %s0, 65
    %s351 = smov 12
    %v352 = vld [vmem:[%s350] ss:$16 sm:%s351]
    %vm353 = vcmask 1043458
    %v354 = vsel %vm353, %v352, %v349
    %s355 = scalar_lea.vmem %s0, 9
    %s356 = smov 48
    %v357 = vld [vmem:[%s355] ss:$16 sm:%s356]
    %vm358 = vcmask 1045508
    %v359 = vsel %vm358, %v357, %v354
    %s360 = scalar_lea.vmem %s0, 9
    %s361 = smov 192
    %v362 = vld [vmem:[%s360] ss:$16 sm:%s361]
    %vm363 = vcmask 1047558
    %v364 = vsel %vm363, %v362, %v359
    %365 = vrot.lane.b32.xlu0 %v364, 16
    %v366 = vpop.permute.xlu0 %365
    %vm367 = vcmask 261248
    %s368 = scalar_lea.vmem [#allocation0], 16
    %369 = vst.msk [vmem:[%s368] sm:$0xf] %vm367, %v366
    %s370 = scalar_lea.vmem [#allocation0], 20
    %371 = vst.msk [vmem:[%s370] sm:$0xf0] %vm367, %v366
    %s373 = sshllo.u32 0, 4
    %v375 = vld [vmem:[#allocation0] sm:%s373]
    %s376 = sshllo.u32 0, 4
    %377 = vst [vmem:[%s1] sm:%s376] %v375
    %s378 = scalar_lea.vmem [#allocation0], 8
    %v379 = vld [vmem:[%s378] sm:%s373]
    %s380 = sshllo.u32 0, 4
    %s381 = scalar_lea.vmem %s1, 4
    %382 = vst [vmem:[%s381] sm:%s380] %v379
    %s383 = scalar_lea.vmem [#allocation0], 16
    %v384 = vld [vmem:[%s383] sm:%s373]
    %s385 = sshllo.u32 0, 4
    %s386 = smul.addr 4, 2
    %s387 = scalar_lea.vmem %s1, %s386
    %388 = vst [vmem:[%s387] sm:%s385] %v384
    %s389 = scalar_lea.vmem [#allocation0], 24
    %v390 = vld [vmem:[%s389] sm:%s373]
    %s391 = sshllo.u32 0, 4
    %s392 = smul.addr 4, 3
    %s393 = scalar_lea.vmem %s1, %s392
    %394 = vst [vmem:[%s393] sm:%s391] %v390

// kernel: _trainer_forward_impl.2
$region0: #{_trainer_forward_impl.2}
  #allocation0 [shape = 'u32[]', space=smem, size = 0x4, offset = 0x4, fixed_abs, tag = 'smem constant byte address 0x4 - core index']
  #allocation1 [shape = 'u32[144,128]{1,0:T(1,128)}', space=vmem, size = 0x12000, scoped, tag = 'internal scratch']
  %s0 = inlined_call_operand.vmem [shape: f32[2,4,256], index: 0, kind: input, shape index: {}]
  %s1 = inlined_call_operand.vmem [shape: bf16[128,4], index: 1, kind: input, shape index: {}]
  %s2 = inlined_call_operand.vmem [shape: f32[2,1,256], index: 2, kind: input, shape index: {}]
  %s3 = inlined_call_operand.vmem [shape: f32[2,1,128], index: 3, kind: output, shape index: {}]
  %s4 = sld [smem:[#allocation0]]
  $region49: #{_trainer_forward_impl.2} parent=0
    _
  %s6 = ssub.s32 1, %s4
  %s7 = scalar_select 0, %s6, %s4
  loop: start=0, step=1, limit=4
  $region2: #{_trainer_forward_impl.2} parent=0 // loop_pre_header
    _
  $region3: #{_trainer_forward_impl.2} parent=0 // loop_header
    %s9 = sphi 0, %s13
    %p10 = scmp.ge.s32.totalorder %s9, 4
    %s16 = sphi 0, %s28
    %s17 = sphi 0, %s24
    %s18 = sphi 0, %s16
    %s19 = sphi 0, %s17
    %s20 = sphi 0, %s18
    %s21 = sphi 0, %s19
    %s33 = sphi 0, %s35
    %s36 = sphi 0, %s33
    %s37 = sphi 0, %s36
    %s53 = sphi 0, %s37
    %s57 = sphi 0, %s57
    %s59 = sphi 0, %s57
    %s60 = sphi 0, %s59
    %s74 = sphi 0, %s60
    %s82 = sphi 0, %s84
    %s85 = sphi 0, %s82
    %s86 = sphi 0, %s85
    %s102 = sphi 0, %s86
    %s108 = sphi 0, %s110
    %s111 = sphi 0, %s108
    %s112 = sphi 0, %s111
    %s128 = sphi 0, %s112
  $region4: #{_trainer_forward_impl.2} parent=0 // loop_header_branch
    %12 = sbr.rel (%p10) target = $region8
  $region5: #{_trainer_forward_impl.2} parent=0 // loop_body
    %s14 = ssub.s32 %s9, 1
    %s15 = ssub.s32 %s9, 2
    %s22 = sadd.s32 1, %s17
    %p23 = scmp.ge.s32.totalorder %s22, 1
    %s24 = scalar_select %p23, 0, %s22
    %s25 = sadd.s32 1, %s16
    %s26 = scalar_select %p23, %s25, %s16
    %p27 = scmp.ge.s32.totalorder %s26, 2
    %s28 = scalar_select %p27, 0, %s26
    %s29 = ssub.s32 %s16, %s28
    %s30 = ssub.s32 %s17, %s24
    %s31 = sor.u32 %s29, %s30
    %p32 = scmp.eq.s32.totalorder %s31, 0
    %s34 = sadd.s32 %s33, 1
    %s35 = scalar_select %p32, %s33, %s34
    %p38 = pneg %p32
    %p39 = scmp.eq.s32.totalorder %s9, 1
    %p40 = por %p38, %p39
    %p41 = scmp.ne.s32.totalorder %s33, %s36
    %p42 = scmp.eq.s32.totalorder %s9, 0
    %p43 = por %p41, %p42
    %p44 = scmp.ne.s32.totalorder %s33, %s36
    %p45 = scmp.eq.s32.totalorder %s14, 1
    %p46 = por %p44, %p45
    %p47 = scmp.ne.s32.totalorder %s36, %s37
    %p48 = scmp.eq.s32.totalorder %s14, 0
    %p49 = por %p47, %p48
    %p50 = scmp.ne.s32.totalorder %s36, %s37
    %p51 = scmp.eq.s32.totalorder %s15, 1
    %p52 = por %p50, %p51
    %p54 = scmp.ne.s32.totalorder %s37, %s53
    %p55 = scmp.eq.s32.totalorder %s15, 0
    %p56 = por %p54, %p55
    %s58 = sadd.s32 %s57, 1
    %p61 = scmp.eq.s32.totalorder %s9, 1
    %p62 = scmp.ne.s32.totalorder %s57, %s59
    %p63 = scmp.eq.s32.totalorder %s9, 0
    %p64 = por %p62, %p63
    %p65 = scmp.ne.s32.totalorder %s57, %s59
    %p66 = scmp.eq.s32.totalorder %s14, 1
    %p67 = por %p65, %p66
    %p68 = scmp.ne.s32.totalorder %s59, %s60
    %p69 = scmp.eq.s32.totalorder %s14, 0
    %p70 = por %p68, %p69
    %p71 = scmp.ne.s32.totalorder %s59, %s60
    %p72 = scmp.eq.s32.totalorder %s15, 1
    %p73 = por %p71, %p72
    %p75 = scmp.ne.s32.totalorder %s60, %s74
    %p76 = scmp.eq.s32.totalorder %s15, 0
    %p77 = por %p75, %p76
    %s78 = ssub.s32 %s16, %s28
    %s79 = ssub.s32 %s17, %s24
    %s80 = sor.u32 %s78, %s79
    %p81 = scmp.eq.s32.totalorder %s80, 0
    %s83 = sadd.s32 %s82, 1
    %s84 = scalar_select %p81, %s82, %s83
    %p87 = pneg %p81
    %p88 = scmp.eq.s32.totalorder %s9, 1
    %p89 = por %p87, %p88
    %p90 = scmp.ne.s32.totalorder %s82, %s85
    %p91 = scmp.eq.s32.totalorder %s9, 0
    %p92 = por %p90, %p91
    %p93 = scmp.ne.s32.totalorder %s82, %s85
    %p94 = scmp.eq.s32.totalorder %s14, 1
    %p95 = por %p93, %p94
    %p96 = scmp.ne.s32.totalorder %s85, %s86
    %p97 = scmp.eq.s32.totalorder %s14, 0
    %p98 = por %p96, %p97
    %p99 = scmp.ne.s32.totalorder %s85, %s86
    %p100 = scmp.eq.s32.totalorder %s15, 1
    %p101 = por %p99, %p100
    %p103 = scmp.ne.s32.totalorder %s86, %s102
    %p104 = scmp.eq.s32.totalorder %s15, 0
    %p105 = por %p103, %p104
    %s106 = ssub.s32 %s16, %s28
    %p107 = scmp.eq.s32.totalorder %s106, 0
    %s109 = sadd.s32 %s108, 1
    %s110 = scalar_select %p107, %s108, %s109
    %p113 = pneg %p107
    %p114 = scmp.eq.s32.totalorder %s9, 1
    %p115 = por %p113, %p114
    %p116 = scmp.ne.s32.totalorder %s108, %s111
    %p117 = scmp.eq.s32.totalorder %s9, 0
    %p118 = por %p116, %p117
    %p119 = scmp.ne.s32.totalorder %s108, %s111
    %p120 = scmp.eq.s32.totalorder %s14, 1
    %p121 = por %p119, %p120
    %p122 = scmp.ne.s32.totalorder %s111, %s112
    %p123 = scmp.eq.s32.totalorder %s14, 0
    %p124 = por %p122, %p123
    %p125 = scmp.ne.s32.totalorder %s111, %s112
    %p126 = scmp.eq.s32.totalorder %s15, 1
    %p127 = por %p125, %p126
    %p129 = scmp.ne.s32.totalorder %s112, %s128
    %p130 = scmp.eq.s32.totalorder %s15, 0
    %p131 = por %p129, %p130
    %p132 = scmp.le.s32.totalorder 1, %s9
    %p133 = scmp.lt.s32.totalorder %s9, 3
    %p134 = pnand %p132, %p133
    %p135 = pneg %p134
    // Predicated region
    $region9: #{_trainer_forward_impl.2} parent=5 // pred_check
      _
    $region10: #{_trainer_forward_impl.2} parent=5 // pred_check_branch
      %137 = sbr.rel (%p134) target = $region12
    $region11: #{_trainer_forward_impl.2} parent=5 // pred_region
      %s138 = ssub.s32 %s9, 1
      // Predicated region
      $region13: #{_trainer_forward_impl.2} parent=11 // pred_check
        %p139 = pneg %p70
      $region14: #{_trainer_forward_impl.2} parent=11 // pred_check_branch
        %141 = sbr.rel (%p139) target = $region16
      $region15: #{_trainer_forward_impl.2} parent=11 // pred_region
        _
      $region16: #{_trainer_forward_impl.2} parent=11 // pred_fallthru
        _
    $region12: #{_trainer_forward_impl.2} parent=5 // pred_fallthru
      _
    %p142 = scmp.lt.s32.totalorder %s9, 2
    // Predicated region
    $region17: #{_trainer_forward_impl.2} parent=5 // pred_check
      %p143 = pneg %p142
    $region18: #{_trainer_forward_impl.2} parent=5 // pred_check_branch
      %145 = sbr.rel (%p143) target = $region20
    $region19: #{_trainer_forward_impl.2} parent=5 // pred_region
      // Predicated region
      $region21: #{_trainer_forward_impl.2} parent=19 // pred_check
        %p146 = pneg %p43
      $region22: #{_trainer_forward_impl.2} parent=19 // pred_check_branch
        %148 = sbr.rel (%p146) target = $region24
      $region23: #{_trainer_forward_impl.2} parent=19 // pred_region
        %s149 = smul.u32 2, %s17
        %p150 = scmp.lt.s32.totalorder %s16, 1
        %s151 = scalar_select %p150, %s16, 1
        %p152 = scmp.lt.s32.totalorder %s149, 1
        %s153 = scalar_select %p152, %s149, 1
        %s154 = smul.addr %s151, 2
        %s155 = sadd.s32 %s153, %s154
        %s156 = smul.addr %s155, 4
        %s157 = scalar_lea.vmem %s0, %s156
        %s158 = smul.u32 2, %s17
      $region24: #{_trainer_forward_impl.2} parent=19 // pred_fallthru
        _
      // Predicated region
      $region25: #{_trainer_forward_impl.2} parent=19 // pred_check
        %p159 = pneg %p92
      $region26: #{_trainer_forward_impl.2} parent=19 // pred_check_branch
        %161 = sbr.rel (%p159) target = $region28
      $region27: #{_trainer_forward_impl.2} parent=19 // pred_region
        %s162 = smul.u32 2, %s17
        %p163 = scmp.lt.s32.totalorder %s16, 1
        %s164 = scalar_select %p163, %s16, 1
        %p165 = scmp.lt.s32.totalorder %s162, 1
        %s166 = scalar_select %p165, %s162, 1
        %s167 = smul.addr %s164, 2
        %s168 = sadd.s32 %s166, %s167
        %s169 = scalar_lea.vmem %s2, %s168
        %s170 = smul.u32 2, %s17
      $region28: #{_trainer_forward_impl.2} parent=19 // pred_fallthru
        _
    $region20: #{_trainer_forward_impl.2} parent=5 // pred_fallthru
      _
    %p171 = scmp.le.s32.totalorder 1, %s9
    %p172 = scmp.lt.s32.totalorder %s9, 3
    %p173 = pnand %p171, %p172
    %p174 = pneg %p173
    // Predicated region
    $region29: #{_trainer_forward_impl.2} parent=5 // pred_check
      _
    $region30: #{_trainer_forward_impl.2} parent=5 // pred_check_branch
      %176 = sbr.rel (%p173) target = $region32
    $region31: #{_trainer_forward_impl.2} parent=5 // pred_region
      %s177 = ssub.s32 %s9, 1
      %s178 = smul.u32 2, %s19
      %p179 = scmp.lt.s32.totalorder %s18, 1
      %s180 = scalar_select %p179, %s18, 1
      %p181 = scmp.lt.s32.totalorder %s178, 1
      %s182 = scalar_select %p181, %s178, 1
      %s183 = smul.addr %s180, 2
      %s184 = sadd.s32 %s182, %s183
      %s185 = smul.addr %s184, 4
      %s186 = scalar_lea.vmem %s0, %s185
      %p187 = pneg %p49
      %p188 = pneg %p46
      %p189 = pneg %p70
      %p190 = pneg %p67
      %s191 = smul.u32 2, %s19
      %p192 = scmp.lt.s32.totalorder %s18, 1
      %s193 = scalar_select %p192, %s18, 1
      %p194 = scmp.lt.s32.totalorder %s191, 1
      %s195 = scalar_select %p194, %s191, 1
      %s196 = smul.addr %s193, 2
      %s197 = sadd.s32 %s195, %s196
      %s198 = scalar_lea.vmem %s2, %s197
      %p199 = pneg %p98
      %p200 = pneg %p95
      %p201 = pneg %p124
      %p202 = pneg %p121
      %p203 = scmp.lt.s32.totalorder %s18, 1
      %s204 = scalar_select %p203, %s18, 1
      %s205 = scalar_lea.vmem %s3, %s204
      %s206 = smul.u32 2, %s19
      %p207 = scmp.lt.s32.totalorder %s18, 1
      %s208 = scalar_select %p207, %s18, 1
      %p209 = scmp.lt.s32.totalorder %s206, 1
      %s210 = scalar_select %p209, %s206, 1
      %s211 = smul.addr %s208, 2
      %s212 = sadd.s32 %s210, %s211
      %s213 = smul.addr %s212, 4
      %s214 = scalar_lea.vmem %s0, %s213
      %s215 = smul.u32 2, %s19
      %s216 = smul.u32 2, %s19
      %p217 = scmp.lt.s32.totalorder %s18, 1
      %s218 = scalar_select %p217, %s18, 1
      %p219 = scmp.lt.s32.totalorder %s216, 1
      %s220 = scalar_select %p219, %s216, 1
      %s221 = smul.addr %s218, 2
      %s222 = sadd.s32 %s220, %s221
      %s223 = scalar_lea.vmem %s2, %s222
      %s224 = smul.u32 2, %s19
      %p225 = scmp.lt.s32.totalorder %s18, 1
      %s226 = scalar_select %p225, %s18, 1
      %s227 = scalar_lea.vmem %s3, %s226
      %p229 = scmp.eq.s32.totalorder %s19, 0
      // Predicated region
      $region33: #{_trainer_forward_impl.2} parent=31 // pred_check
        %p230 = pneg %p229
      $region34: #{_trainer_forward_impl.2} parent=31 // pred_check_branch
        %232 = sbr.rel (%p230) target = $region36
      $region35: #{_trainer_forward_impl.2} parent=31 // pred_region
        %233 = vst [vmem:[%s227] sm:$0x1] 0.0
      $region36: #{_trainer_forward_impl.2} parent=31 // pred_fallthru
        _
      %v234 = vld [vmem:[%s214] sm:$0xff]
      %v236 = vcombine.high %v234, %v234
      %v238 = vpack.c.bf16 %v234, %v234
      %v239 = vpack.c.bf16 %v236, %v236
      %v240 = vld [vmem:[%s1] sm:$0xf]
      %v241 = vld [vmem:[%s1 + $0x4] sm:$0xf]
      %v242 = vld [vmem:[%s1 + $0x8] sm:$0xf]
      %v243 = vld [vmem:[%s1 + $0xc] sm:$0xf]
      %v244 = vld [vmem:[%s1 + $0x10] sm:$0xf]
      %v245 = vld [vmem:[%s1 + $0x14] sm:$0xf]
      %v246 = vld [vmem:[%s1 + $0x18] sm:$0xf]
      %v247 = vld [vmem:[%s1 + $0x1c] sm:$0xf]
      %v248 = vld [vmem:[%s1 + $0x20] sm:$0xf]
      %v249 = vld [vmem:[%s1 + $0x24] sm:$0xf]
      %v250 = vld [vmem:[%s1 + $0x28] sm:$0xf]
      %v251 = vld [vmem:[%s1 + $0x2c] sm:$0xf]
      %v252 = vld [vmem:[%s1 + $0x30] sm:$0xf]
      %v253 = vld [vmem:[%s1 + $0x34] sm:$0xf]
      %v254 = vld [vmem:[%s1 + $0x38] sm:$0xf]
      %v255 = vld [vmem:[%s1 + $0x3c] sm:$0xf]
      %v272 = vunpack.c.l.b16 %v240
      %v273 = vunpack.c.l.b16 %v241
      %v274 = vunpack.c.l.b16 %v242
      %v275 = vunpack.c.l.b16 %v243
      %v276 = vunpack.c.l.b16 %v244
      %v277 = vunpack.c.l.b16 %v245
      %v278 = vunpack.c.l.b16 %v246
      %v279 = vunpack.c.l.b16 %v247
      %v280 = vunpack.c.l.b16 %v248
      %v281 = vunpack.c.l.b16 %v249
      %v282 = vunpack.c.l.b16 %v250
      %v283 = vunpack.c.l.b16 %v251
      %v284 = vunpack.c.l.b16 %v252
      %v285 = vunpack.c.l.b16 %v253
      %v286 = vunpack.c.l.b16 %v254
      %v287 = vunpack.c.l.b16 %v255
      %v288 = vpack.c.b16 %v273, %v272
      %v289 = vpack.c.b16 %v275, %v274
      %v290 = vpack.c.b16 %v277, %v276
      %v291 = vpack.c.b16 %v279, %v278
      %v292 = vpack.c.b16 %v281, %v280
      %v293 = vpack.c.b16 %v283, %v282
      %v294 = vpack.c.b16 %v285, %v284
      %v295 = vpack.c.b16 %v287, %v286
      %vm296 = vcmask 31744
      %v298 = vsel %vm296, %v288, 0
      %v301 = vsel %vm296, %v289, 0
      %v304 = vsel %vm296, %v290, 0
      %v307 = vsel %vm296, %v291, 0
      %v310 = vsel %vm296, %v292, 0
      %v313 = vsel %vm296, %v293, 0
      %v316 = vsel %vm296, %v294, 0
      %v319 = vsel %vm296, %v295, 0
      %vm321 = vcmask 1041408
      %v323 = vsel %vm321, %v238, 0
      %v326 = vsel %vm321, %v239, 0
      %328 = vmatprep.subr.bf16.mxu0 %v326
      %329 = vmatpush1.bf16.msra.mxu0 %v323
      %330 = vmatprep.subr.bf16.mxu0 0
      %331 = vmatpush1.bf16.msra.mxu0 0
      %332 = vmatprep.subr.bf16.mxu0 0
      %333 = vmatpush1.bf16.msra.mxu0 0
      %334 = vmatprep.subr.bf16.mxu0 0
      %335 = vmatpush1.bf16.msra.mxu0 0
      %336 = vmatprep.subr.bf16.mxu0 0
      %337 = vmatpush1.bf16.msra.mxu0 0
      %338 = vmatprep.subr.bf16.mxu0 0
      %339 = vmatpush1.bf16.msra.mxu0 0
      %340 = vmatprep.subr.bf16.mxu0 0
      %341 = vmatpush1.bf16.msra.mxu0 0
      %342 = vmatprep.subr.bf16.mxu0 0
      %343 = vmatpush1.bf16.msra.mxu0 0
      %344 = vmatprep.subr.bf16.mxu0 0
      %345 = vmatpush1.bf16.msra.mxu0 0
      %346 = vmatprep.subr.bf16.mxu0 0
      %347 = vmatpush1.bf16.msra.mxu0 0
      %348 = vmatprep.subr.bf16.mxu0 0
      %349 = vmatpush1.bf16.msra.mxu0 0
      %350 = vmatprep.subr.bf16.mxu0 0
      %351 = vmatpush1.bf16.msra.mxu0 0
      %352 = vmatprep.subr.bf16.mxu0 0
      %353 = vmatpush1.bf16.msra.mxu0 0
      %354 = vmatprep.subr.bf16.mxu0 0
      %355 = vmatpush1.bf16.msra.mxu0 0
      %356 = vmatprep.subr.bf16.mxu0 0
      %357 = vmatpush1.bf16.msra.mxu0 0
      %358 = vmatprep.subr.bf16.mxu0 0
      %359 = vmatpush1.bf16.msra.mxu0 0
      %360 = vmatprep.mubr.bf16.mxu0 0
      %361 = vmatmul.mubr.bf16.gmra.mrb[0].mxu0 %v298
      %v362 = vpop.f32.mrb[0].mxu0
      %v363 = vadd.f32 0.0, %v362
      %v364 = vpop.f32.mrb[0].mxu0
      %v365 = vadd.f32 0.0, %v364
      %v366 = vpop.f32.mrb[0].mxu0
      %v367 = vadd.f32 0.0, %v366
      %v368 = vpop.f32.mrb[0].mxu0
      %v369 = vadd.f32 0.0, %v368
      %370 = vmatprep.mubr.bf16.mxu0 0
      %371 = vmatmul.mubr.bf16.gmra.mrb[0].mxu0 %v301
      %v372 = vpop.f32.mrb[0].mxu0
      %v373 = vadd.f32 0.0, %v372
      %v374 = vpop.f32.mrb[0].mxu0
      %v375 = vadd.f32 0.0, %v374
      %v376 = vpop.f32.mrb[0].mxu0
      %v377 = vadd.f32 0.0, %v376
      %v378 = vpop.f32.mrb[0].mxu0
      %v379 = vadd.f32 0.0, %v378
      %380 = vmatprep.mubr.bf16.mxu0 0
      %381 = vmatmul.mubr.bf16.gmra.mrb[0].mxu0 %v304
      %v382 = vpop.f32.mrb[0].mxu0
      %v383 = vadd.f32 0.0, %v382
      %v384 = vpop.f32.mrb[0].mxu0
      %v385 = vadd.f32 0.0, %v384
      %v386 = vpop.f32.mrb[0].mxu0
      %v387 = vadd.f32 0.0, %v386
      %v388 = vpop.f32.mrb[0].mxu0
      %v389 = vadd.f32 0.0, %v388
      %390 = vmatprep.mubr.bf16.mxu0 0
      %391 = vmatmul.mubr.bf16.gmra.mrb[0].mxu0 %v307
      %v392 = vpop.f32.mrb[0].mxu0
      %v393 = vadd.f32 0.0, %v392
      %v394 = vpop.f32.mrb[0].mxu0
      %v395 = vadd.f32 0.0, %v394
      %v396 = vpop.f32.mrb[0].mxu0
      %v397 = vadd.f32 0.0, %v396
      %v398 = vpop.f32.mrb[0].mxu0
      %v399 = vadd.f32 0.0, %v398
      %400 = vmatprep.mubr.bf16.mxu0 0
      %401 = vmatmul.mubr.bf16.gmra.mrb[0].mxu0 %v310
      %v402 = vpop.f32.mrb[0].mxu0
      %v403 = vadd.f32 0.0, %v402
      %v404 = vpop.f32.mrb[0].mxu0
      %v405 = vadd.f32 0.0, %v404
      %v406 = vpop.f32.mrb[0].mxu0
      %v407 = vadd.f32 0.0, %v406
      %v408 = vpop.f32.mrb[0].mxu0
      %v409 = vadd.f32 0.0, %v408
      %410 = vmatprep.mubr.bf16.mxu0 0
      %411 = vmatmul.mubr.bf16.gmra.mrb[0].mxu0 %v313
      %v412 = vpop.f32.mrb[0].mxu0
      %v413 = vadd.f32 0.0, %v412
      %v414 = vpop.f32.mrb[0].mxu0
      %v415 = vadd.f32 0.0, %v414
      %v416 = vpop.f32.mrb[0].mxu0
      %v417 = vadd.f32 0.0, %v416
      %v418 = vpop.f32.mrb[0].mxu0
      %v419 = vadd.f32 0.0, %v418
      %420 = vmatprep.mubr.bf16.mxu0 0
      %421 = vmatmul.mubr.bf16.gmra.mrb[0].mxu0 %v316
      %v422 = vpop.f32.mrb[0].mxu0
      %v423 = vadd.f32 0.0, %v422
      %v424 = vpop.f32.mrb[0].mxu0
      %v425 = vadd.f32 0.0, %v424
      %v426 = vpop.f32.mrb[0].mxu0
      %v427 = vadd.f32 0.0, %v426
      %v428 = vpop.f32.mrb[0].mxu0
      %v429 = vadd.f32 0.0, %v428
      %430 = vmatprep.mubr.bf16.mxu0 0
      %431 = vmatmul.mubr.bf16.gmra.mrb[0].mxu0 %v319
      %v432 = vpop.f32.mrb[0].mxu0
      %v433 = vadd.f32 0.0, %v432
      %v434 = vpop.f32.mrb[0].mxu0
      %v435 = vadd.f32 0.0, %v434
      %v436 = vpop.f32.mrb[0].mxu0
      %v437 = vadd.f32 0.0, %v436
      %v438 = vpop.f32.mrb[0].mxu0
      %v439 = vadd.f32 0.0, %v438
      %440 = vdwg.mxu0
      %v441 = vmax.f32 %v363, 0.0
      %v442 = vmax.f32 %v365, 0.0
      %v443 = vmax.f32 %v367, 0.0
      %v444 = vmax.f32 %v369, 0.0
      %v445 = vmax.f32 %v373, 0.0
      %v446 = vmax.f32 %v375, 0.0
      %v447 = vmax.f32 %v377, 0.0
      %v448 = vmax.f32 %v379, 0.0
      %v449 = vmax.f32 %v383, 0.0
      %v450 = vmax.f32 %v385, 0.0
      %v451 = vmax.f32 %v387, 0.0
      %v452 = vmax.f32 %v389, 0.0
      %v453 = vmax.f32 %v393, 0.0
      %v454 = vmax.f32 %v395, 0.0
      %v455 = vmax.f32 %v397, 0.0
      %v456 = vmax.f32 %v399, 0.0
      %v457 = vmax.f32 %v403, 0.0
      %v458 = vmax.f32 %v405, 0.0
      %v459 = vmax.f32 %v407, 0.0
      %v460 = vmax.f32 %v409, 0.0
      %v461 = vmax.f32 %v413, 0.0
      %v462 = vmax.f32 %v415, 0.0
      %v463 = vmax.f32 %v417, 0.0
      %v464 = vmax.f32 %v419, 0.0
      %v465 = vmax.f32 %v423, 0.0
      %v466 = vmax.f32 %v425, 0.0
      %v467 = vmax.f32 %v427, 0.0
      %v468 = vmax.f32 %v429, 0.0
      %v469 = vmax.f32 %v433, 0.0
      %v470 = vmax.f32 %v435, 0.0
      %v471 = vmax.f32 %v437, 0.0
      %v472 = vmax.f32 %v439, 0.0
      %v473 = vld [vmem:[%s223] sm:$0x3]
      %v474 = vmul.f32 %v473, 2.0
      %v475 = vsub.f32 %v474, 1.0
      %v477 = vlaneseq
      %v478 = vshrl.u32 %v477, 7
      %v479 = vsub.s32 0, %v478
      %v480 = vrot.slane %v475, %v479
      %v481 = vlaneseq
      %v482 = vshrl.u32 %v481, 7
      %v483 = vsub.s32 1, %v482
      %v484 = vrot.slane %v475, %v483
      %v487 = vpack.c.bf16 %v480, %v480
      %v488 = vpack.c.bf16 %v484, %v484
      %v489 = vpack.c.bf16 %v443, %v441
      %v490 = vpack.c.bf16 %v444, %v442
      %v491 = vpack.c.bf16 %v447, %v445
      %v492 = vpack.c.bf16 %v448, %v446
      %v493 = vpack.c.bf16 %v451, %v449
      %v494 = vpack.c.bf16 %v452, %v450
      %v495 = vpack.c.bf16 %v455, %v453
      %v496 = vpack.c.bf16 %v456, %v454
      %v497 = vpack.c.bf16 %v459, %v457
      %v498 = vpack.c.bf16 %v460, %v458
      %v499 = vpack.c.bf16 %v463, %v461
      %v500 = vpack.c.bf16 %v464, %v462
      %v501 = vpack.c.bf16 %v467, %v465
      %v502 = vpack.c.bf16 %v468, %v466
      %v503 = vpack.c.bf16 %v471, %v469
      %v504 = vpack.c.bf16 %v472, %v470
      %505 = vmatprep.subr.bf16.mxu0 %v490
      %506 = vmatpush1.bf16.xpose.msra.mxu0 %v489
      %507 = vmatprep.subr.bf16.mxu0 %v492
      %508 = vmatpush1.bf16.xpose.msra.mxu0 %v491
      %509 = vmatprep.subr.bf16.mxu0 %v494
      %510 = vmatpush1.bf16.xpose.msra.mxu0 %v493
      %511 = vmatprep.subr.bf16.mxu0 %v496
      %512 = vmatpush1.bf16.xpose.msra.mxu0 %v495
      %513 = vmatprep.subr.bf16.mxu0 %v498
      %514 = vmatpush1.bf16.xpose.msra.mxu0 %v497
      %515 = vmatprep.subr.bf16.mxu0 %v500
      %516 = vmatpush1.bf16.xpose.msra.mxu0 %v499
      %517 = vmatprep.subr.bf16.mxu0 %v502
      %518 = vmatpush1.bf16.xpose.msra.mxu0 %v501
      %519 = vmatprep.subr.bf16.mxu0 %v504
      %520 = vmatpush1.bf16.xpose.msra.mxu0 %v503
      %521 = vmatprep.subr.bf16.mxu0 0
      %522 = vmatpush1.bf16.xpose.msra.mxu0 0
      %523 = vmatprep.subr.bf16.mxu0 0
      %524 = vmatpush1.bf16.xpose.msra.mxu0 0
      %525 = vmatprep.subr.bf16.mxu0 0
      %526 = vmatpush1.bf16.xpose.msra.mxu0 0
      %527 = vmatprep.subr.bf16.mxu0 0
      %528 = vmatpush1.bf16.xpose.msra.mxu0 0
      %529 = vmatprep.subr.bf16.mxu0 0
      %530 = vmatpush1.bf16.xpose.msra.mxu0 0
      %531 = vmatprep.subr.bf16.mxu0 0
      %532 = vmatpush1.bf16.xpose.msra.mxu0 0
      %533 = vmatprep.subr.bf16.mxu0 0
      %534 = vmatpush1.bf16.xpose.msra.mxu0 0
      %535 = vmatprep.subr.bf16.mxu0 0
      %536 = vmatpush1.bf16.xpose.msra.mxu0 0
      %537 = vmatprep.mubr.bf16.mxu0 %v488
      %538 = vmatmul.mubr.bf16.gmra.mrb[0].mxu0 %v487
      %v539 = vpop.f32.mrb[0].mxu0
      %v540 = vadd.f32 0.0, %v539
      %v541 = vpop.f32.mrb[0].mxu0
      %v542 = vpop.f32.mrb[0].mxu0
      %v543 = vpop.f32.mrb[0].mxu0
      %544 = vdwg.mxu0
      %v545 = vld [vmem:[%s227] sm:$0x1]
      %v546 = vmul.f32 %v540, 0.00390625
      %v547 = vadd.f32 %v545, %v546
      %548 = vst [vmem:[%s227] sm:$0x1] %v547
      %p549 = scmp.lt.s32.totalorder %s18, 1
      %s550 = scalar_select %p549, %s18, 1
      %s551 = scalar_lea.vmem %s3, %s550
      // Predicated region
      $region37: #{_trainer_forward_impl.2} parent=31 // pred_check
        %p552 = pneg %p121
      $region38: #{_trainer_forward_impl.2} parent=31 // pred_check_branch
        %554 = sbr.rel (%p552) target = $region40
      $region39: #{_trainer_forward_impl.2} parent=31 // pred_region
        _
      $region40: #{_trainer_forward_impl.2} parent=31 // pred_fallthru
        _
    $region32: #{_trainer_forward_impl.2} parent=5 // pred_fallthru
      _
    %p555 = scmp.le.s32.totalorder 2, %s9
    // Predicated region
    $region41: #{_trainer_forward_impl.2} parent=5 // pred_check
      %p556 = pneg %p555
    $region42: #{_trainer_forward_impl.2} parent=5 // pred_check_branch
      %558 = sbr.rel (%p556) target = $region44
    $region43: #{_trainer_forward_impl.2} parent=5 // pred_region
      %s559 = ssub.s32 %s9, 2
      // Predicated region
      $region45: #{_trainer_forward_impl.2} parent=43 // pred_check
        %p560 = pneg %p127
      $region46: #{_trainer_forward_impl.2} parent=43 // pred_check_branch
        %562 = sbr.rel (%p560) target = $region48
      $region47: #{_trainer_forward_impl.2} parent=43 // pred_region
        %p563 = scmp.lt.s32.totalorder %s20, 1
        %s564 = scalar_select %p563, %s20, 1
        %s565 = scalar_lea.vmem %s3, %s564
      $region48: #{_trainer_forward_impl.2} parent=43 // pred_fallthru
        _
    $region44: #{_trainer_forward_impl.2} parent=5 // pred_fallthru
      _
  $region6: #{_trainer_forward_impl.2} parent=0 // loop_footer
    %s13 = sadd.s32 1, %s9
  $region7: #{_trainer_forward_impl.2} parent=0 // loop_footer_branch
    %8 = sbr.rel target = $region3
  $region8: #{_trainer_forward_impl.2} parent=0 // loop_exit
    _

// kernel: _trainer_forward_impl.3
$region0: #{_trainer_forward_impl.3}
  #allocation0 [shape = 'u32[]', space=smem, size = 0x4, offset = 0x4, fixed_abs, tag = 'smem constant byte address 0x4 - core index']
  #allocation1 [shape = 'u32[144,128]{1,0:T(1,128)}', space=vmem, size = 0x12000, scoped, tag = 'internal scratch']
  #allocation2 [shape = 'f32[1,256]{1,0:T(1,128)}', space=vmem, size = 0x400, scoped, tag = 'scratch operand']
  #allocation3 [shape = 'f32[1,256]{1,0:T(1,128)}', space=vmem, size = 0x400, scoped, tag = 'scratch operand']
  #allocation4 [shape = 'f32[1,256]{1,0:T(1,128)}', space=vmem, size = 0x400, scoped, tag = 'scratch operand']
  #allocation5 [shape = 'f32[1]{0:T(128)S(6)}', space=smem, size = 0x200, scoped, tag = 'scoped memory for _trainer_forward_impl.3']
  %s0 = inlined_call_operand.vmem [shape: f32[3,2,4,256], index: 0, kind: input, shape index: {}]
  %s1 = inlined_call_operand.vmem [shape: bf16[128,4], index: 1, kind: input, shape index: {}]
  %s2 = inlined_call_operand.vmem [shape: f32[2,1,128], index: 2, kind: input, shape index: {}]
  %s3 = inlined_call_operand.vmem [shape: f32[3,2,1,256], index: 3, kind: input, shape index: {}]
  %s4 = inlined_call_operand.<no memory space> [shape: f32[1], index: 4, kind: input, shape index: {}]
  %s5 = inlined_call_operand.vmem [shape: f32[2,2,1,128], index: 5, kind: output, shape index: {0}]
  %s6 = inlined_call_operand.vmem [shape: f32[2,2,1,128], index: 6, kind: output, shape index: {1}]
  %7 = xla_tuple %s5, %s6
  %s8 = sld [smem:[#allocation0]]
  $region69: #{_trainer_forward_impl.3} parent=0
    _
  %s10 = ssub.s32 1, %s8
  %s11 = scalar_select 0, %s10, %s8
  %12 = sst [smem:[#allocation5]] %s4
  loop: start=0, step=1, limit=6
  $region2: #{_trainer_forward_impl.3} parent=0 // loop_pre_header
    _
  $region3: #{_trainer_forward_impl.3} parent=0 // loop_header
    %s14 = sphi 0, %s18
    %p15 = scmp.ge.s32.totalorder %s14, 6
    %s21 = sphi 0, %s40
    %s22 = sphi 0, %s36
    %s23 = sphi 0, %s32
    %s24 = sphi 0, %s21
    %s25 = sphi 0, %s22
    %s26 = sphi 0, %s23
    %s27 = sphi 0, %s24
    %s28 = sphi 0, %s25
    %s29 = sphi 0, %s26
    %s49 = sphi 0, %s51
    %s52 = sphi 0, %s49
    %s53 = sphi 0, %s52
    %s69 = sphi 0, %s53
    %s73 = sphi 0, %s73
    %s75 = sphi 0, %s73
    %s76 = sphi 0, %s75
    %s90 = sphi 0, %s76
    %s96 = sphi 0, %s98
    %s99 = sphi 0, %s96
    %s100 = sphi 0, %s99
    %s116 = sphi 0, %s100
    %s128 = sphi 0, %s130
    %s131 = sphi 0, %s128
    %s132 = sphi 0, %s131
    %s148 = sphi 0, %s132
    %s152 = sphi 0, %s152
    %s154 = sphi 0, %s152
    %s155 = sphi 0, %s154
    %s169 = sphi 0, %s155
    %s177 = sphi 0, %s179
    %s180 = sphi 0, %s177
    %s181 = sphi 0, %s180
    %s197 = sphi 0, %s181
    %s205 = sphi 0, %s207
    %s208 = sphi 0, %s205
    %s209 = sphi 0, %s208
    %s225 = sphi 0, %s209
  $region4: #{_trainer_forward_impl.3} parent=0 // loop_header_branch
    %17 = sbr.rel (%p15) target = $region8
  $region5: #{_trainer_forward_impl.3} parent=0 // loop_body
    %s19 = ssub.s32 %s14, 1
    %s20 = ssub.s32 %s14, 2
    %s30 = sadd.s32 1, %s23
    %p31 = scmp.ge.s32.totalorder %s30, 1
    %s32 = scalar_select %p31, 0, %s30
    %s33 = sadd.s32 1, %s22
    %s34 = scalar_select %p31, %s33, %s22
    %p35 = scmp.ge.s32.totalorder %s34, 2
    %s36 = scalar_select %p35, 0, %s34
    %s37 = sadd.s32 1, %s21
    %s38 = scalar_select %p35, %s37, %s21
    %p39 = scmp.ge.s32.totalorder %s38, 2
    %s40 = scalar_select %p39, 0, %s38
    %s41 = sadd.s32 %s22, 1
    %s42 = sadd.s32 %s36, 1
    %s43 = ssub.s32 %s41, %s42
    %s44 = ssub.s32 %s21, %s40
    %s45 = sor.u32 %s43, %s44
    %s46 = ssub.s32 %s23, %s32
    %s47 = sor.u32 %s45, %s46
    %p48 = scmp.eq.s32.totalorder %s47, 0
    %s50 = sadd.s32 %s49, 1
    %s51 = scalar_select %p48, %s49, %s50
    %p54 = pneg %p48
    %p55 = scmp.eq.s32.totalorder %s14, 3
    %p56 = por %p54, %p55
    %p57 = scmp.ne.s32.totalorder %s49, %s52
    %p58 = scmp.eq.s32.totalorder %s14, 0
    %p59 = por %p57, %p58
    %p60 = scmp.ne.s32.totalorder %s49, %s52
    %p61 = scmp.eq.s32.totalorder %s19, 3
    %p62 = por %p60, %p61
    %p63 = scmp.ne.s32.totalorder %s52, %s53
    %p64 = scmp.eq.s32.totalorder %s19, 0
    %p65 = por %p63, %p64
    %p66 = scmp.ne.s32.totalorder %s52, %s53
    %p67 = scmp.eq.s32.totalorder %s20, 3
    %p68 = por %p66, %p67
    %p70 = scmp.ne.s32.totalorder %s53, %s69
    %p71 = scmp.eq.s32.totalorder %s20, 0
    %p72 = por %p70, %p71
    %s74 = sadd.s32 %s73, 1
    %p77 = scmp.eq.s32.totalorder %s14, 3
    %p78 = scmp.ne.s32.totalorder %s73, %s75
    %p79 = scmp.eq.s32.totalorder %s14, 0
    %p80 = por %p78, %p79
    %p81 = scmp.ne.s32.totalorder %s73, %s75
    %p82 = scmp.eq.s32.totalorder %s19, 3
    %p83 = por %p81, %p82
    %p84 = scmp.ne.s32.totalorder %s75, %s76
    %p85 = scmp.eq.s32.totalorder %s19, 0
    %p86 = por %p84, %p85
    %p87 = scmp.ne.s32.totalorder %s75, %s76
    %p88 = scmp.eq.s32.totalorder %s20, 3
    %p89 = por %p87, %p88
    %p91 = scmp.ne.s32.totalorder %s76, %s90
    %p92 = scmp.eq.s32.totalorder %s20, 0
    %p93 = por %p91, %p92
    %s94 = ssub.s32 %s21, %s40
    %p95 = scmp.eq.s32.totalorder %s94, 0
    %s97 = sadd.s32 %s96, 1
    %s98 = scalar_select %p95, %s96, %s97
    %p101 = pneg %p95
    %p102 = scmp.eq.s32.totalorder %s14, 3
    %p103 = por %p101, %p102
    %p104 = scmp.ne.s32.totalorder %s96, %s99
    %p105 = scmp.eq.s32.totalorder %s14, 0
    %p106 = por %p104, %p105
    %p107 = scmp.ne.s32.totalorder %s96, %s99
    %p108 = scmp.eq.s32.totalorder %s19, 3
    %p109 = por %p107, %p108
    %p110 = scmp.ne.s32.totalorder %s99, %s100
    %p111 = scmp.eq.s32.totalorder %s19, 0
    %p112 = por %p110, %p111
    %p113 = scmp.ne.s32.totalorder %s99, %s100
    %p114 = scmp.eq.s32.totalorder %s20, 3
    %p115 = por %p113, %p114
    %p117 = scmp.ne.s32.totalorder %s100, %s116
    %p118 = scmp.eq.s32.totalorder %s20, 0
    %p119 = por %p117, %p118
    %s120 = sadd.s32 %s22, 1
    %s121 = sadd.s32 %s36, 1
    %s122 = ssub.s32 %s120, %s121
    %s123 = ssub.s32 %s21, %s40
    %s124 = sor.u32 %s122, %s123
    %s125 = ssub.s32 %s23, %s32
    %s126 = sor.u32 %s124, %s125
    %p127 = scmp.eq.s32.totalorder %s126, 0
    %s129 = sadd.s32 %s128, 1
    %s130 = scalar_select %p127, %s128, %s129
    %p133 = pneg %p127
    %p134 = scmp.eq.s32.totalorder %s14, 3
    %p135 = por %p133, %p134
    %p136 = scmp.ne.s32.totalorder %s128, %s131
    %p137 = scmp.eq.s32.totalorder %s14, 0
    %p138 = por %p136, %p137
    %p139 = scmp.ne.s32.totalorder %s128, %s131
    %p140 = scmp.eq.s32.totalorder %s19, 3
    %p141 = por %p139, %p140
    %p142 = scmp.ne.s32.totalorder %s131, %s132
    %p143 = scmp.eq.s32.totalorder %s19, 0
    %p144 = por %p142, %p143
    %p145 = scmp.ne.s32.totalorder %s131, %s132
    %p146 = scmp.eq.s32.totalorder %s20, 3
    %p147 = por %p145, %p146
    %p149 = scmp.ne.s32.totalorder %s132, %s148
    %p150 = scmp.eq.s32.totalorder %s20, 0
    %p151 = por %p149, %p150
    %s153 = sadd.s32 %s152, 1
    %p156 = scmp.eq.s32.totalorder %s14, 3
    %p157 = scmp.ne.s32.totalorder %s152, %s154
    %p158 = scmp.eq.s32.totalorder %s14, 0
    %p159 = por %p157, %p158
    %p160 = scmp.ne.s32.totalorder %s152, %s154
    %p161 = scmp.eq.s32.totalorder %s19, 3
    %p162 = por %p160, %p161
    %p163 = scmp.ne.s32.totalorder %s154, %s155
    %p164 = scmp.eq.s32.totalorder %s19, 0
    %p165 = por %p163, %p164
    %p166 = scmp.ne.s32.totalorder %s154, %s155
    %p167 = scmp.eq.s32.totalorder %s20, 3
    %p168 = por %p166, %p167
    %p170 = scmp.ne.s32.totalorder %s155, %s169
    %p171 = scmp.eq.s32.totalorder %s20, 0
    %p172 = por %p170, %p171
    %s173 = ssub.s32 %s21, %s40
    %s174 = ssub.s32 %s22, %s36
    %s175 = sor.u32 %s173, %s174
    %p176 = scmp.eq.s32.totalorder %s175, 0
    %s178 = sadd.s32 %s177, 1
    %s179 = scalar_select %p176, %s177, %s178
    %p182 = pneg %p176
    %p183 = scmp.eq.s32.totalorder %s14, 3
    %p184 = por %p182, %p183
    %p185 = scmp.ne.s32.totalorder %s177, %s180
    %p186 = scmp.eq.s32.totalorder %s14, 0
    %p187 = por %p185, %p186
    %p188 = scmp.ne.s32.totalorder %s177, %s180
    %p189 = scmp.eq.s32.totalorder %s19, 3
    %p190 = por %p188, %p189
    %p191 = scmp.ne.s32.totalorder %s180, %s181
    %p192 = scmp.eq.s32.totalorder %s19, 0
    %p193 = por %p191, %p192
    %p194 = scmp.ne.s32.totalorder %s180, %s181
    %p195 = scmp.eq.s32.totalorder %s20, 3
    %p196 = por %p194, %p195
    %p198 = scmp.ne.s32.totalorder %s181, %s197
    %p199 = scmp.eq.s32.totalorder %s20, 0
    %p200 = por %p198, %p199
    %s201 = ssub.s32 %s21, %s40
    %s202 = ssub.s32 %s22, %s36
    %s203 = sor.u32 %s201, %s202
    %p204 = scmp.eq.s32.totalorder %s203, 0
    %s206 = sadd.s32 %s205, 1
    %s207 = scalar_select %p204, %s205, %s206
    %p210 = pneg %p204
    %p211 = scmp.eq.s32.totalorder %s14, 3
    %p212 = por %p210, %p211
    %p213 = scmp.ne.s32.totalorder %s205, %s208
    %p214 = scmp.eq.s32.totalorder %s14, 0
    %p215 = por %p213, %p214
    %p216 = scmp.ne.s32.totalorder %s205, %s208
    %p217 = scmp.eq.s32.totalorder %s19, 3
    %p218 = por %p216, %p217
    %p219 = scmp.ne.s32.totalorder %s208, %s209
    %p220 = scmp.eq.s32.totalorder %s19, 0
    %p221 = por %p219, %p220
    %p222 = scmp.ne.s32.totalorder %s208, %s209
    %p223 = scmp.eq.s32.totalorder %s20, 3
    %p224 = por %p222, %p223
    %p226 = scmp.ne.s32.totalorder %s209, %s225
    %p227 = scmp.eq.s32.totalorder %s20, 0
    %p228 = por %p226, %p227
    %p229 = scmp.le.s32.totalorder 1, %s14
    %p230 = scmp.lt.s32.totalorder %s14, 5
    %p231 = pnand %p229, %p230
    %p232 = pneg %p231
    // Predicated region
    $region9: #{_trainer_forward_impl.3} parent=5 // pred_check
      _
    $region10: #{_trainer_forward_impl.3} parent=5 // pred_check_branch
      %234 = sbr.rel (%p231) target = $region12
    $region11: #{_trainer_forward_impl.3} parent=5 // pred_region
      %s235 = ssub.s32 %s14, 1
      // Predicated region
      $region13: #{_trainer_forward_impl.3} parent=11 // pred_check
        %p236 = pneg %p86
      $region14: #{_trainer_forward_impl.3} parent=11 // pred_check_branch
        %238 = sbr.rel (%p236) target = $region16
      $region15: #{_trainer_forward_impl.3} parent=11 // pred_region
        _
      $region16: #{_trainer_forward_impl.3} parent=11 // pred_fallthru
        _
      // Predicated region
      $region17: #{_trainer_forward_impl.3} parent=11 // pred_check
        %p239 = pneg %p165
      $region18: #{_trainer_forward_impl.3} parent=11 // pred_check_branch
        %241 = sbr.rel (%p239) target = $region20
      $region19: #{_trainer_forward_impl.3} parent=11 // pred_region
        _
      $region20: #{_trainer_forward_impl.3} parent=11 // pred_fallthru
        _
    $region12: #{_trainer_forward_impl.3} parent=5 // pred_fallthru
      _
    %p242 = scmp.lt.s32.totalorder %s14, 4
    // Predicated region
    $region21: #{_trainer_forward_impl.3} parent=5 // pred_check
      %p243 = pneg %p242
    $region22: #{_trainer_forward_impl.3} parent=5 // pred_check_branch
      %245 = sbr.rel (%p243) target = $region24
    $region23: #{_trainer_forward_impl.3} parent=5 // pred_region
      // Predicated region
      $region25: #{_trainer_forward_impl.3} parent=23 // pred_check
        %p246 = pneg %p59
      $region26: #{_trainer_forward_impl.3} parent=23 // pred_check_branch
        %248 = sbr.rel (%p246) target = $region28
      $region27: #{_trainer_forward_impl.3} parent=23 // pred_region
        %s249 = sadd.s32 %s22, 1
        %s250 = smul.u32 2, %s23
        %p251 = scmp.lt.s32.totalorder %s249, 2
        %s252 = scalar_select %p251, %s249, 2
        %p253 = scmp.lt.s32.totalorder %s21, 1
        %s254 = scalar_select %p253, %s21, 1
        %p255 = scmp.lt.s32.totalorder %s250, 1
        %s256 = scalar_select %p255, %s250, 1
        %s257 = smul.addr %s254, 2
        %s258 = sadd.s32 %s256, %s257
        %s259 = smul.addr %s252, 4
        %s260 = sadd.s32 %s258, %s259
        %s261 = smul.addr %s260, 4
        %s262 = scalar_lea.vmem %s0, %s261
        %s263 = sadd.s32 %s22, 1
        %s264 = smul.u32 2, %s23
      $region28: #{_trainer_forward_impl.3} parent=23 // pred_fallthru
        _
      // Predicated region
      $region29: #{_trainer_forward_impl.3} parent=23 // pred_check
        %p265 = pneg %p106
      $region30: #{_trainer_forward_impl.3} parent=23 // pred_check_branch
        %267 = sbr.rel (%p265) target = $region32
      $region31: #{_trainer_forward_impl.3} parent=23 // pred_region
        %p268 = scmp.lt.s32.totalorder %s21, 1
        %s269 = scalar_select %p268, %s21, 1
        %s270 = scalar_lea.vmem %s2, %s269
      $region32: #{_trainer_forward_impl.3} parent=23 // pred_fallthru
        _
      // Predicated region
      $region33: #{_trainer_forward_impl.3} parent=23 // pred_check
        %p271 = pneg %p138
      $region34: #{_trainer_forward_impl.3} parent=23 // pred_check_branch
        %273 = sbr.rel (%p271) target = $region36
      $region35: #{_trainer_forward_impl.3} parent=23 // pred_region
        %s274 = sadd.s32 %s22, 1
        %s275 = smul.u32 2, %s23
        %p276 = scmp.lt.s32.totalorder %s274, 2
        %s277 = scalar_select %p276, %s274, 2
        %p278 = scmp.lt.s32.totalorder %s21, 1
        %s279 = scalar_select %p278, %s21, 1
        %p280 = scmp.lt.s32.totalorder %s275, 1
        %s281 = scalar_select %p280, %s275, 1
        %s282 = smul.addr %s279, 2
        %s283 = sadd.s32 %s281, %s282
        %s284 = smul.addr %s277, 4
        %s285 = sadd.s32 %s283, %s284
        %s286 = scalar_lea.vmem %s3, %s285
        %s287 = sadd.s32 %s22, 1
        %s288 = smul.u32 2, %s23
      $region36: #{_trainer_forward_impl.3} parent=23 // pred_fallthru
        _
    $region24: #{_trainer_forward_impl.3} parent=5 // pred_fallthru
      _
    %p289 = scmp.le.s32.totalorder 1, %s14
    %p290 = scmp.lt.s32.totalorder %s14, 5
    %p291 = pnand %p289, %p290
    %p292 = pneg %p291
    // Predicated region
    $region37: #{_trainer_forward_impl.3} parent=5 // pred_check
      _
    $region38: #{_trainer_forward_impl.3} parent=5 // pred_check_branch
      %294 = sbr.rel (%p291) target = $region40
    $region39: #{_trainer_forward_impl.3} parent=5 // pred_region
      %s295 = ssub.s32 %s14, 1
      %s296 = sadd.s32 %s25, 1
      %s297 = smul.u32 2, %s26
      %p298 = scmp.lt.s32.totalorder %s296, 2
      %s299 = scalar_select %p298, %s296, 2
      %p300 = scmp.lt.s32.totalorder %s24, 1
      %s301 = scalar_select %p300, %s24, 1
      %p302 = scmp.lt.s32.totalorder %s297, 1
      %s303 = scalar_select %p302, %s297, 1
      %s304 = smul.addr %s301, 2
      %s305 = sadd.s32 %s303, %s304
      %s306 = smul.addr %s299, 4
      %s307 = sadd.s32 %s305, %s306
      %s308 = smul.addr %s307, 4
      %s309 = scalar_lea.vmem %s0, %s308
      %p310 = pneg %p65
      %p311 = pneg %p62
      %p312 = pneg %p86
      %p313 = pneg %p83
      %p314 = scmp.lt.s32.totalorder %s24, 1
      %s315 = scalar_select %p314, %s24, 1
      %s316 = scalar_lea.vmem %s2, %s315
      %p317 = pneg %p112
      %p318 = pneg %p109
      %s319 = sadd.s32 %s25, 1
      %s320 = smul.u32 2, %s26
      %p321 = scmp.lt.s32.totalorder %s319, 2
      %s322 = scalar_select %p321, %s319, 2
      %p323 = scmp.lt.s32.totalorder %s24, 1
      %s324 = scalar_select %p323, %s24, 1
      %p325 = scmp.lt.s32.totalorder %s320, 1
      %s326 = scalar_select %p325, %s320, 1
      %s327 = smul.addr %s324, 2
      %s328 = sadd.s32 %s326, %s327
      %s329 = smul.addr %s322, 4
      %s330 = sadd.s32 %s328, %s329
      %s331 = scalar_lea.vmem %s3, %s330
      %p332 = pneg %p144
      %p333 = pneg %p141
      %p334 = pneg %p165
      %p335 = pneg %p162
      %p336 = pneg %p193
      %p337 = pneg %p190
      %p338 = scmp.lt.s32.totalorder %s24, 1
      %s339 = scalar_select %p338, %s24, 1
      %p340 = scmp.lt.s32.totalorder %s25, 1
      %s341 = scalar_select %p340, %s25, 1
      %s342 = smul.addr %s339, 2
      %s343 = sadd.s32 %s341, %s342
      %s344 = scalar_lea.vmem %s5, %s343
      %p345 = pneg %p221
      %p346 = pneg %p218
      %p347 = scmp.lt.s32.totalorder %s24, 1
      %s348 = scalar_select %p347, %s24, 1
      %p349 = scmp.lt.s32.totalorder %s25, 1
      %s350 = scalar_select %p349, %s25, 1
      %s351 = smul.addr %s348, 2
      %s352 = sadd.s32 %s350, %s351
      %s353 = scalar_lea.vmem %s6, %s352
      %s354 = sadd.s32 %s25, 1
      %s355 = smul.u32 2, %s26
      %p356 = scmp.lt.s32.totalorder %s354, 2
      %s357 = scalar_select %p356, %s354, 2
      %p358 = scmp.lt.s32.totalorder %s24, 1
      %s359 = scalar_select %p358, %s24, 1
      %p360 = scmp.lt.s32.totalorder %s355, 1
      %s361 = scalar_select %p360, %s355, 1
      %s362 = smul.addr %s359, 2
      %s363 = sadd.s32 %s361, %s362
      %s364 = smul.addr %s357, 4
      %s365 = sadd.s32 %s363, %s364
      %s366 = smul.addr %s365, 4
      %s367 = scalar_lea.vmem %s0, %s366
      %s368 = sadd.s32 %s25, 1
      %s369 = smul.u32 2, %s26
      %p370 = scmp.lt.s32.totalorder %s24, 1
      %s371 = scalar_select %p370, %s24, 1
      %s372 = scalar_lea.vmem %s2, %s371
      %s373 = sadd.s32 %s25, 1
      %s374 = smul.u32 2, %s26
      %p375 = scmp.lt.s32.totalorder %s373, 2
      %s376 = scalar_select %p375, %s373, 2
      %p377 = scmp.lt.s32.totalorder %s24, 1
      %s378 = scalar_select %p377, %s24, 1
      %p379 = scmp.lt.s32.totalorder %s374, 1
      %s380 = scalar_select %p379, %s374, 1
      %s381 = smul.addr %s378, 2
      %s382 = sadd.s32 %s380, %s381
      %s383 = smul.addr %s376, 4
      %s384 = sadd.s32 %s382, %s383
      %s385 = scalar_lea.vmem %s3, %s384
      %s386 = sadd.s32 %s25, 1
      %s387 = smul.u32 2, %s26
      %p388 = scmp.lt.s32.totalorder %s24, 1
      %s389 = scalar_select %p388, %s24, 1
      %p390 = scmp.lt.s32.totalorder %s25, 1
      %s391 = scalar_select %p390, %s25, 1
      %s392 = smul.addr %s389, 2
      %s393 = sadd.s32 %s391, %s392
      %s394 = scalar_lea.vmem %s5, %s393
      %p395 = scmp.lt.s32.totalorder %s24, 1
      %s396 = scalar_select %p395, %s24, 1
      %p397 = scmp.lt.s32.totalorder %s25, 1
      %s398 = scalar_select %p397, %s25, 1
      %s399 = smul.addr %s396, 2
      %s400 = sadd.s32 %s398, %s399
      %s401 = scalar_lea.vmem %s6, %s400
      %p403 = scmp.eq.s32.totalorder %s26, 0
      // Predicated region
      $region41: #{_trainer_forward_impl.3} parent=39 // pred_check
        %p404 = pneg %p403
      $region42: #{_trainer_forward_impl.3} parent=39 // pred_check_branch
        %406 = sbr.rel (%p404) target = $region44
      $region43: #{_trainer_forward_impl.3} parent=39 // pred_region
        %v407 = vlaneseq
        %vm408 = vcmp.ge.s32.totalorder %v407, 0
        %vm409 = vcmp.lt.s32.totalorder %v407, 256
        %vm410 = vmand %vm408, %vm409
        %411 = vst.msk [vmem:[#allocation2] sm:$0x3] %vm410, 0.0
        %412 = vst.msk [vmem:[#allocation3] sm:$0x3] %vm410, 0.0
        %413 = vst.msk [vmem:[#allocation4] sm:$0x3] %vm410, 0.0
      $region44: #{_trainer_forward_impl.3} parent=39 // pred_fallthru
        _
      %v414 = vld [vmem:[%s367] sm:$0xff]
      %v416 = vcombine.high %v414, %v414
      %v418 = vpack.c.bf16 %v414, %v414
      %v419 = vpack.c.bf16 %v416, %v416
      %v420 = vld [vmem:[%s1] sm:$0xf]
      %v421 = vld [vmem:[%s1 + $0x4] sm:$0xf]
      %v422 = vld [vmem:[%s1 + $0x8] sm:$0xf]
      %v423 = vld [vmem:[%s1 + $0xc] sm:$0xf]
      %v424 = vld [vmem:[%s1 + $0x10] sm:$0xf]
      %v425 = vld [vmem:[%s1 + $0x14] sm:$0xf]
      %v426 = vld [vmem:[%s1 + $0x18] sm:$0xf]
      %v427 = vld [vmem:[%s1 + $0x1c] sm:$0xf]
      %v428 = vld [vmem:[%s1 + $0x20] sm:$0xf]
      %v429 = vld [vmem:[%s1 + $0x24] sm:$0xf]
      %v430 = vld [vmem:[%s1 + $0x28] sm:$0xf]
      %v431 = vld [vmem:[%s1 + $0x2c] sm:$0xf]
      %v432 = vld [vmem:[%s1 + $0x30] sm:$0xf]
      %v433 = vld [vmem:[%s1 + $0x34] sm:$0xf]
      %v434 = vld [vmem:[%s1 + $0x38] sm:$0xf]
      %v435 = vld [vmem:[%s1 + $0x3c] sm:$0xf]
      %v452 = vunpack.c.l.b16 %v420
      %v453 = vunpack.c.l.b16 %v421
      %v454 = vunpack.c.l.b16 %v422
      %v455 = vunpack.c.l.b16 %v423
      %v456 = vunpack.c.l.b16 %v424
      %v457 = vunpack.c.l.b16 %v425
      %v458 = vunpack.c.l.b16 %v426
      %v459 = vunpack.c.l.b16 %v427
      %v460 = vunpack.c.l.b16 %v428
      %v461 = vunpack.c.l.b16 %v429
      %v462 = vunpack.c.l.b16 %v430
      %v463 = vunpack.c.l.b16 %v431
      %v464 = vunpack.c.l.b16 %v432
      %v465 = vunpack.c.l.b16 %v433
      %v466 = vunpack.c.l.b16 %v434
      %v467 = vunpack.c.l.b16 %v435
      %v468 = vpack.c.b16 %v453, %v452
      %v469 = vpack.c.b16 %v455, %v454
      %v470 = vpack.c.b16 %v457, %v456
      %v471 = vpack.c.b16 %v459, %v458
      %v472 = vpack.c.b16 %v461, %v460
      %v473 = vpack.c.b16 %v463, %v462
      %v474 = vpack.c.b16 %v465, %v464
      %v475 = vpack.c.b16 %v467, %v466
      %vm476 = vcmask 31744
      %v478 = vsel %vm476, %v468, 0
      %v481 = vsel %vm476, %v469, 0
      %v484 = vsel %vm476, %v470, 0
      %v487 = vsel %vm476, %v471, 0
      %v490 = vsel %vm476, %v472, 0
      %v493 = vsel %vm476, %v473, 0
      %v496 = vsel %vm476, %v474, 0
      %v499 = vsel %vm476, %v475, 0
      %vm501 = vcmask 1041408
      %v503 = vsel %vm501, %v418, 0
      %v506 = vsel %vm501, %v419, 0
      %508 = vmatprep.subr.bf16.mxu0 %v506
      %509 = vmatpush1.bf16.msra.mxu0 %v503
      %510 = vmatprep.subr.bf16.mxu0 0
      %511 = vmatpush1.bf16.msra.mxu0 0
      %512 = vmatprep.subr.bf16.mxu0 0
      %513 = vmatpush1.bf16.msra.mxu0 0
      %514 = vmatprep.subr.bf16.mxu0 0
      %515 = vmatpush1.bf16.msra.mxu0 0
      %516 = vmatprep.subr.bf16.mxu0 0
      %517 = vmatpush1.bf16.msra.mxu0 0
      %518 = vmatprep.subr.bf16.mxu0 0
      %519 = vmatpush1.bf16.msra.mxu0 0
      %520 = vmatprep.subr.bf16.mxu0 0
      %521 = vmatpush1.bf16.msra.mxu0 0
      %522 = vmatprep.subr.bf16.mxu0 0
      %523 = vmatpush1.bf16.msra.mxu0 0
      %524 = vmatprep.subr.bf16.mxu0 0
      %525 = vmatpush1.bf16.msra.mxu0 0
      %526 = vmatprep.subr.bf16.mxu0 0
      %527 = vmatpush1.bf16.msra.mxu0 0
      %528 = vmatprep.subr.bf16.mxu0 0
      %529 = vmatpush1.bf16.msra.mxu0 0
      %530 = vmatprep.subr.bf16.mxu0 0
      %531 = vmatpush1.bf16.msra.mxu0 0
      %532 = vmatprep.subr.bf16.mxu0 0
      %533 = vmatpush1.bf16.msra.mxu0 0
      %534 = vmatprep.subr.bf16.mxu0 0
      %535 = vmatpush1.bf16.msra.mxu0 0
      %536 = vmatprep.subr.bf16.mxu0 0
      %537 = vmatpush1.bf16.msra.mxu0 0
      %538 = vmatprep.subr.bf16.mxu0 0
      %539 = vmatpush1.bf16.msra.mxu0 0
      %540 = vmatprep.mubr.bf16.mxu0 0
      %541 = vmatmul.mubr.bf16.gmra.mrb[0].mxu0 %v478
      %v542 = vpop.f32.mrb[0].mxu0
      %v543 = vadd.f32 0.0, %v542
      %v544 = vpop.f32.mrb[0].mxu0
      %v545 = vadd.f32 0.0, %v544
      %v546 = vpop.f32.mrb[0].mxu0
      %v547 = vadd.f32 0.0, %v546
      %v548 = vpop.f32.mrb[0].mxu0
      %v549 = vadd.f32 0.0, %v548
      %550 = vmatprep.mubr.bf16.mxu0 0
      %551 = vmatmul.mubr.bf16.gmra.mrb[0].mxu0 %v481
      %v552 = vpop.f32.mrb[0].mxu0
      %v553 = vadd.f32 0.0, %v552
      %v554 = vpop.f32.mrb[0].mxu0
      %v555 = vadd.f32 0.0, %v554
      %v556 = vpop.f32.mrb[0].mxu0
      %v557 = vadd.f32 0.0, %v556
      %v558 = vpop.f32.mrb[0].mxu0
      %v559 = vadd.f32 0.0, %v558
      %560 = vmatprep.mubr.bf16.mxu0 0
      %561 = vmatmul.mubr.bf16.gmra.mrb[0].mxu0 %v484
      %v562 = vpop.f32.mrb[0].mxu0
      %v563 = vadd.f32 0.0, %v562
      %v564 = vpop.f32.mrb[0].mxu0
      %v565 = vadd.f32 0.0, %v564
      %v566 = vpop.f32.mrb[0].mxu0
      %v567 = vadd.f32 0.0, %v566
      %v568 = vpop.f32.mrb[0].mxu0
      %v569 = vadd.f32 0.0, %v568
      %570 = vmatprep.mubr.bf16.mxu0 0
      %571 = vmatmul.mubr.bf16.gmra.mrb[0].mxu0 %v487
      %v572 = vpop.f32.mrb[0].mxu0
      %v573 = vadd.f32 0.0, %v572
      %v574 = vpop.f32.mrb[0].mxu0
      %v575 = vadd.f32 0.0, %v574
      %v576 = vpop.f32.mrb[0].mxu0
      %v577 = vadd.f32 0.0, %v576
      %v578 = vpop.f32.mrb[0].mxu0
      %v579 = vadd.f32 0.0, %v578
      %580 = vmatprep.mubr.bf16.mxu0 0
      %581 = vmatmul.mubr.bf16.gmra.mrb[0].mxu0 %v490
      %v582 = vpop.f32.mrb[0].mxu0
      %v583 = vadd.f32 0.0, %v582
      %v584 = vpop.f32.mrb[0].mxu0
      %v585 = vadd.f32 0.0, %v584
      %v586 = vpop.f32.mrb[0].mxu0
      %v587 = vadd.f32 0.0, %v586
      %v588 = vpop.f32.mrb[0].mxu0
      %v589 = vadd.f32 0.0, %v588
      %590 = vmatprep.mubr.bf16.mxu0 0
      %591 = vmatmul.mubr.bf16.gmra.mrb[0].mxu0 %v493
      %v592 = vpop.f32.mrb[0].mxu0
      %v593 = vadd.f32 0.0, %v592
      %v594 = vpop.f32.mrb[0].mxu0
      %v595 = vadd.f32 0.0, %v594
      %v596 = vpop.f32.mrb[0].mxu0
      %v597 = vadd.f32 0.0, %v596
      %v598 = vpop.f32.mrb[0].mxu0
      %v599 = vadd.f32 0.0, %v598
      %600 = vmatprep.mubr.bf16.mxu0 0
      %601 = vmatmul.mubr.bf16.gmra.mrb[0].mxu0 %v496
      %v602 = vpop.f32.mrb[0].mxu0
      %v603 = vadd.f32 0.0, %v602
      %v604 = vpop.f32.mrb[0].mxu0
      %v605 = vadd.f32 0.0, %v604
      %v606 = vpop.f32.mrb[0].mxu0
      %v607 = vadd.f32 0.0, %v606
      %v608 = vpop.f32.mrb[0].mxu0
      %v609 = vadd.f32 0.0, %v608
      %610 = vmatprep.mubr.bf16.mxu0 0
      %611 = vmatmul.mubr.bf16.gmra.mrb[0].mxu0 %v499
      %v612 = vpop.f32.mrb[0].mxu0
      %v613 = vadd.f32 0.0, %v612
      %v614 = vpop.f32.mrb[0].mxu0
      %v615 = vadd.f32 0.0, %v614
      %v616 = vpop.f32.mrb[0].mxu0
      %v617 = vadd.f32 0.0, %v616
      %v618 = vpop.f32.mrb[0].mxu0
      %v619 = vadd.f32 0.0, %v618
      %620 = vdwg.mxu0
      %v621 = vmax.f32 %v543, 0.0
      %v622 = vmax.f32 %v545, 0.0
      %v623 = vmax.f32 %v547, 0.0
      %v624 = vmax.f32 %v549, 0.0
      %v625 = vmax.f32 %v553, 0.0
      %v626 = vmax.f32 %v555, 0.0
      %v627 = vmax.f32 %v557, 0.0
      %v628 = vmax.f32 %v559, 0.0
      %v629 = vmax.f32 %v563, 0.0
      %v630 = vmax.f32 %v565, 0.0
      %v631 = vmax.f32 %v567, 0.0
      %v632 = vmax.f32 %v569, 0.0
      %v633 = vmax.f32 %v573, 0.0
      %v634 = vmax.f32 %v575, 0.0
      %v635 = vmax.f32 %v577, 0.0
      %v636 = vmax.f32 %v579, 0.0
      %v637 = vmax.f32 %v583, 0.0
      %v638 = vmax.f32 %v585, 0.0
      %v639 = vmax.f32 %v587, 0.0
      %v640 = vmax.f32 %v589, 0.0
      %v641 = vmax.f32 %v593, 0.0
      %v642 = vmax.f32 %v595, 0.0
      %v643 = vmax.f32 %v597, 0.0
      %v644 = vmax.f32 %v599, 0.0
      %v645 = vmax.f32 %v603, 0.0
      %v646 = vmax.f32 %v605, 0.0
      %v647 = vmax.f32 %v607, 0.0
      %v648 = vmax.f32 %v609, 0.0
      %v649 = vmax.f32 %v613, 0.0
      %v650 = vmax.f32 %v615, 0.0
      %v651 = vmax.f32 %v617, 0.0
      %v652 = vmax.f32 %v619, 0.0
      %v653 = vld [vmem:[%s372] sm:$0x1]
      %v654 = vpack.c.bf16 %v653, %v653
      %v655 = vpack.c.bf16 %v623, %v621
      %v656 = vpack.c.bf16 %v624, %v622
      %v657 = vpack.c.bf16 %v627, %v625
      %v658 = vpack.c.bf16 %v628, %v626
      %v659 = vpack.c.bf16 %v631, %v629
      %v660 = vpack.c.bf16 %v632, %v630
      %v661 = vpack.c.bf16 %v635, %v633
      %v662 = vpack.c.bf16 %v636, %v634
      %v663 = vpack.c.bf16 %v639, %v637
      %v664 = vpack.c.bf16 %v640, %v638
      %v665 = vpack.c.bf16 %v643, %v641
      %v666 = vpack.c.bf16 %v644, %v642
      %v667 = vpack.c.bf16 %v647, %v645
      %v668 = vpack.c.bf16 %v648, %v646
      %v669 = vpack.c.bf16 %v651, %v649
      %v670 = vpack.c.bf16 %v652, %v650
      %s671 = sld [smem:[#allocation5]]
      %v672 = vstv %s671
      %673 = vmatprep.subr.bf16.mxu0 %v656
      %674 = vmatpush1.bf16.msra.mxu0 %v655
      %675 = vmatprep.subr.bf16.mxu0 %v658
      %676 = vmatpush1.bf16.msra.mxu0 %v657
      %677 = vmatprep.subr.bf16.mxu0 %v660
      %678 = vmatpush1.bf16.msra.mxu0 %v659
      %679 = vmatprep.subr.bf16.mxu0 %v662
      %680 = vmatpush1.bf16.msra.mxu0 %v661
      %681 = vmatprep.subr.bf16.mxu0 %v664
      %682 = vmatpush1.bf16.msra.mxu0 %v663
      %683 = vmatprep.subr.bf16.mxu0 %v666
      %684 = vmatpush1.bf16.msra.mxu0 %v665
      %685 = vmatprep.subr.bf16.mxu0 %v668
      %686 = vmatpush1.bf16.msra.mxu0 %v667
      %687 = vmatprep.subr.bf16.mxu0 %v670
      %688 = vmatpush1.bf16.msra.mxu0 %v669
      %689 = vmatprep.subr.bf16.mxu0 0
      %690 = vmatpush1.bf16.msra.mxu0 0
      %691 = vmatprep.subr.bf16.mxu0 0
      %692 = vmatpush1.bf16.msra.mxu0 0
      %693 = vmatprep.subr.bf16.mxu0 0
      %694 = vmatpush1.bf16.msra.mxu0 0
      %695 = vmatprep.subr.bf16.mxu0 0
      %696 = vmatpush1.bf16.msra.mxu0 0
      %697 = vmatprep.subr.bf16.mxu0 0
      %698 = vmatpush1.bf16.msra.mxu0 0
      %699 = vmatprep.subr.bf16.mxu0 0
      %700 = vmatpush1.bf16.msra.mxu0 0
      %701 = vmatprep.subr.bf16.mxu0 0
      %702 = vmatpush1.bf16.msra.mxu0 0
      %703 = vmatprep.subr.bf16.mxu0 0
      %704 = vmatpush1.bf16.msra.mxu0 0
      %705 = vmatprep.mubr.bf16.mxu0 0
      %706 = vmatmul.mubr.bf16.gmra.mrb[0].mxu0 %v654
      %v707 = vpop.f32.mrb[0].mxu0
      %v708 = vadd.f32 %v672, %v707
      %v709 = vpop.f32.mrb[0].mxu0
      %v710 = vadd.f32 %v672, %v709
      %v711 = vpop.f32.mrb[0].mxu0
      %v712 = vpop.f32.mrb[0].mxu0
      %713 = vdwg.mxu0
      %v714 = vld [vmem:[%s385] sm:$0x3]
      %vm715 = vcmp.gt.f32.partialorder %v708, 0.0
      %vm716 = vcmp.gt.f32.partialorder %v710, 0.0
      %vm717 = vcmp.gt.f32.partialorder %v714, 0.5
      %v718 = vld [vmem:[#allocation2] sm:$0x3]
      %v719 = vsel %vm717, 1, 0
      %v720 = vlaneseq
      %v721 = vshrl.u32 %v720, 7
      %v722 = vsub.s32 0, %v721
      %v723 = vrot.slane %v719, %v722
      %v724 = vlaneseq
      %v725 = vshrl.u32 %v724, 7
      %v726 = vsub.s32 1, %v725
      %v727 = vrot.slane %v719, %v726
      %vm728 = vcmp.ne.s32.totalorder %v723, 0
      %vm729 = vcmp.ne.s32.totalorder %v727, 0
      %vm730 = vmand %vm715, %vm728
      %vm731 = vmand %vm716, %vm729
      %v732 = vsel %vm730, 1, 0
      %v733 = vsel %vm731, 1, 0
      %v734 = vcvt.s32.f32 %v732
      %v735 = vcvt.s32.f32 %v733
      %v738 = vcombine.low %v734, %v735
      %v740 = vunpack.c.l.s4 1966171168
      %v741 = vunpack.c.0.s8 %v740
      %v742 = vlaneseq
      %v743 = vshrl.u32 %v742, 7
      %v744 = vsub.s32 %v741, %v743
      %v745 = vrot.slane %v738, %v744
      %v747 = vunpack.c.l.s4 1966171168
      %v748 = vunpack.c.0.s8 %v747
      %v749 = vlaneseq
      %v750 = vshrl.u32 %v749, 7
      %v751 = vsub.s32 %v748, %v750
      %v752 = vrot.slane %v745, %v751
      %v754 = vadd.f32 %v718, %v752
      %v755 = vlaneseq
      %vm756 = vcmp.ge.s32.totalorder %v755, 0
      %vm757 = vcmp.lt.s32.totalorder %v755, 256
      %vm758 = vmand %vm756, %vm757
      %759 = vst.msk [vmem:[#allocation2] sm:$0x3] %vm758, %v754
      %v760 = vld [vmem:[#allocation3] sm:$0x3]
      %vm761 = vmor %vm715, %vm728
      %vm762 = vmor %vm716, %vm729
      %v763 = vsel %vm761, 1, 0
      %v764 = vsel %vm762, 1, 0
      %v765 = vcvt.s32.f32 %v763
      %v766 = vcvt.s32.f32 %v764
      %v769 = vcombine.low %v765, %v766
      %v771 = vunpack.c.l.s4 1966171168
      %v772 = vunpack.c.0.s8 %v771
      %v773 = vlaneseq
      %v774 = vshrl.u32 %v773, 7
      %v775 = vsub.s32 %v772, %v774
      %v776 = vrot.slane %v769, %v775
      %v778 = vunpack.c.l.s4 1966171168
      %v779 = vunpack.c.0.s8 %v778
      %v780 = vlaneseq
      %v781 = vshrl.u32 %v780, 7
      %v782 = vsub.s32 %v779, %v781
      %v783 = vrot.slane %v776, %v782
      %v785 = vadd.f32 %v760, %v783
      %786 = vst.msk [vmem:[#allocation3] sm:$0x3] %vm758, %v785
      %v787 = vmax.f32 %v708, 0.0
      %v788 = vmax.f32 %v710, 0.0
      %v790 = vlaneseq
      %v791 = vshrl.u32 %v790, 7
      %v792 = vsub.s32 0, %v791
      %v793 = vrot.slane %v714, %v792
      %v794 = vlaneseq
      %v795 = vshrl.u32 %v794, 7
      %v796 = vsub.s32 1, %v795
      %v797 = vrot.slane %v714, %v796
      %v800 = vmul.f32 %v708, %v793
      %v801 = vmul.f32 %v710, %v797
      %v802 = vsub.f32 %v787, %v800
      %v803 = vsub.f32 %v788, %v801
      %v804 = vand.u32 2147483647, %v708
      %v805 = vand.u32 2147483647, %v710
      %v806 = vsub.f32 0.0, %v804
      %v807 = vsub.f32 0.0, %v805
      %v808 = vmul.f32 %v806, 1.442695
      %v809 = vpow.pop %v808
      %v810 = vmul.f32 %v807, 1.442695
      %v811 = vpow.pop %v810
      %v812 = vadd.f32 %v809, 1.0
      %v813 = vadd.f32 %v811, 1.0
      %v814 = vlog2.pop %v812
      %v815 = vmul.f32 %v814, 0.6931472
      %v816 = vlog2.pop %v813
      %v817 = vmul.f32 %v816, 0.6931472
      %v818 = vadd.f32 %v802, %v815
      %v819 = vadd.f32 %v803, %v817
      %v820 = vld [vmem:[#allocation4] sm:$0x3]
      %v823 = vcombine.low %v818, %v819
      %v825 = vunpack.c.l.s4 1966171168
      %v826 = vunpack.c.0.s8 %v825
      %v827 = vlaneseq
      %v828 = vshrl.u32 %v827, 7
      %v829 = vsub.s32 %v826, %v828
      %v830 = vrot.slane %v823, %v829
      %v832 = vunpack.c.l.s4 1966171168
      %v833 = vunpack.c.0.s8 %v832
      %v834 = vlaneseq
      %v835 = vshrl.u32 %v834, 7
      %v836 = vsub.s32 %v833, %v835
      %v837 = vrot.slane %v830, %v836
      %v839 = vadd.f32 %v820, %v837
      %840 = vst.msk [vmem:[#allocation4] sm:$0x3] %vm758, %v839
      // Predicated region
      $region45: #{_trainer_forward_impl.3} parent=39 // pred_check
        %p841 = pneg %p403
      $region46: #{_trainer_forward_impl.3} parent=39 // pred_check_branch
        %843 = sbr.rel (%p841) target = $region48
      $region47: #{_trainer_forward_impl.3} parent=39 // pred_region
        %v844 = vld [vmem:[#allocation2] sm:$0x3]
        %v846 = vlaneseq
        %v847 = vshrl.u32 %v846, 7
        %v848 = vsub.s32 0, %v847
        %v849 = vrot.slane %v844, %v848
        %v850 = vlaneseq
        %v851 = vshrl.u32 %v850, 7
        %v852 = vsub.s32 1, %v851
        %v853 = vrot.slane %v844, %v852
        %vm856 = vcmask 1040384
        %v857 = vsel %vm856, %v849, 0.0
        %v858 = vsel %vm856, %v853, 0.0
        %v859 = vadd.f32 %v857, %v858
        %860 = vadd.xlane.f32.xlu0 %v859
        %v861 = vpop.xlane.xlu0 %860
        %v862 = vld [vmem:[#allocation3] sm:$0x3]
        %v864 = vlaneseq
        %v865 = vshrl.u32 %v864, 7
        %v866 = vsub.s32 0, %v865
        %v867 = vrot.slane %v862, %v866
        %v868 = vlaneseq
        %v869 = vshrl.u32 %v868, 7
        %v870 = vsub.s32 1, %v869
        %v871 = vrot.slane %v862, %v870
        %v874 = vsel %vm856, %v867, 0.0
        %v875 = vsel %vm856, %v871, 0.0
        %v876 = vadd.f32 %v874, %v875
        %877 = vadd.xlane.f32.xlu0 %v876
        %v878 = vpop.xlane.xlu0 %877
        %vm879 = vcmp.gt.f32.partialorder %v878, 0.0
        %v880 = vrcp.pop %v878
        %v881 = vmul.f32 %v861, %v880
        %v882 = vsel %vm879, %v881, 1.0
        %883 = vst [vmem:[%s394] sm:$0x1] %v882
        %v884 = vld [vmem:[#allocation4] sm:$0x3]
        %v886 = vlaneseq
        %v887 = vshrl.u32 %v886, 7
        %v888 = vsub.s32 0, %v887
        %v889 = vrot.slane %v884, %v888
        %v890 = vlaneseq
        %v891 = vshrl.u32 %v890, 7
        %v892 = vsub.s32 1, %v891
        %v893 = vrot.slane %v884, %v892
        %v896 = vsel %vm856, %v889, 0.0
        %v897 = vsel %vm856, %v893, 0.0
        %v898 = vadd.f32 %v896, %v897
        %899 = vadd.xlane.f32.xlu0 %v898
        %v900 = vpop.xlane.xlu0 %899
        %901 = vst [vmem:[%s401] sm:$0x1] %v900
      $region48: #{_trainer_forward_impl.3} parent=39 // pred_fallthru
        _
      %p902 = scmp.lt.s32.totalorder %s24, 1
      %s903 = scalar_select %p902, %s24, 1
      %p904 = scmp.lt.s32.totalorder %s25, 1
      %s905 = scalar_select %p904, %s25, 1
      %s906 = smul.addr %s903, 2
      %s907 = sadd.s32 %s905, %s906
      %s908 = scalar_lea.vmem %s5, %s907
      %p909 = scmp.lt.s32.totalorder %s24, 1
      %s910 = scalar_select %p909, %s24, 1
      %p911 = scmp.lt.s32.totalorder %s25, 1
      %s912 = scalar_select %p911, %s25, 1
      %s913 = smul.addr %s910, 2
      %s914 = sadd.s32 %s912, %s913
      %s915 = scalar_lea.vmem %s6, %s914
      // Predicated region
      $region49: #{_trainer_forward_impl.3} parent=39 // pred_check
        %p916 = pneg %p190
      $region50: #{_trainer_forward_impl.3} parent=39 // pred_check_branch
        %918 = sbr.rel (%p916) target = $region52
      $region51: #{_trainer_forward_impl.3} parent=39 // pred_region
        _
      $region52: #{_trainer_forward_impl.3} parent=39 // pred_fallthru
        _
      // Predicated region
      $region53: #{_trainer_forward_impl.3} parent=39 // pred_check
        %p919 = pneg %p218
      $region54: #{_trainer_forward_impl.3} parent=39 // pred_check_branch
        %921 = sbr.rel (%p919) target = $region56
      $region55: #{_trainer_forward_impl.3} parent=39 // pred_region
        _
      $region56: #{_trainer_forward_impl.3} parent=39 // pred_fallthru
        _
    $region40: #{_trainer_forward_impl.3} parent=5 // pred_fallthru
      _
    %p922 = scmp.le.s32.totalorder 2, %s14
    // Predicated region
    $region57: #{_trainer_forward_impl.3} parent=5 // pred_check
      %p923 = pneg %p922
    $region58: #{_trainer_forward_impl.3} parent=5 // pred_check_branch
      %925 = sbr.rel (%p923) target = $region60
    $region59: #{_trainer_forward_impl.3} parent=5 // pred_region
      %s926 = ssub.s32 %s14, 2
      // Predicated region
      $region61: #{_trainer_forward_impl.3} parent=59 // pred_check
        %p927 = pneg %p196
      $region62: #{_trainer_forward_impl.3} parent=59 // pred_check_branch
        %929 = sbr.rel (%p927) target = $region64
      $region63: #{_trainer_forward_impl.3} parent=59 // pred_region
        %p930 = scmp.lt.s32.totalorder %s27, 1
        %s931 = scalar_select %p930, %s27, 1
        %p932 = scmp.lt.s32.totalorder %s28, 1
        %s933 = scalar_select %p932, %s28, 1
        %s934 = smul.addr %s931, 2
        %s935 = sadd.s32 %s933, %s934
        %s936 = scalar_lea.vmem %s5, %s935
      $region64: #{_trainer_forward_impl.3} parent=59 // pred_fallthru
        _
      // Predicated region
      $region65: #{_trainer_forward_impl.3} parent=59 // pred_check
        %p937 = pneg %p224
      $region66: #{_trainer_forward_impl.3} parent=59 // pred_check_branch
        %939 = sbr.rel (%p937) target = $region68
      $region67: #{_trainer_forward_impl.3} parent=59 // pred_region
        %p940 = scmp.lt.s32.totalorder %s27, 1
        %s941 = scalar_select %p940, %s27, 1
        %p942 = scmp.lt.s32.totalorder %s28, 1
        %s943 = scalar_select %p942, %s28, 1
        %s944 = smul.addr %s941, 2
        %s945 = sadd.s32 %s943, %s944
        %s946 = scalar_lea.vmem %s6, %s945
      $region68: #{_trainer_forward_impl.3} parent=59 // pred_fallthru
        _
    $region60: #{_trainer_forward_impl.3} parent=5 // pred_fallthru
      _
  $region6: #{_trainer_forward_impl.3} parent=0 // loop_footer
    %s18 = sadd.s32 1, %s14
  $region7: #{_trainer_forward_impl.3} parent=0 // loop_footer_branch
    %13 = sbr.rel target = $region3
  $region8: #{_trainer_forward_impl.3} parent=0 // loop_exit
    _

</llo_original>
